<compile_context>
chip_gen: v6e
topology: v6e:2x2x1
jax: 0.10.0
libtpu: 0.0.40
codegen_flags: <defaults>
</compile_context>

<pallas_src>
import functools

import jax
import jax.numpy as jnp
import numpy as np
from jax.experimental import pallas as pl
from jax.experimental.pallas import tpu as pltpu

NEG_INF = -1e30
LANES = 128


# ---------------------------------------------------------------------------
# Pallas kernel: one batch segment (L lanes, padded to Lp) per grid step.
# ---------------------------------------------------------------------------
def inception_kernel(
        x_ref,                     # (Cin, Lp)  this batch element
        wstem_ref, bstem_ref,      # fused p1 / p2a / p3a 1x1 conv
        wp4_ref, bp4_ref,          # branch-4 1x1 conv
        waa_ref, baa_ref,          # block-diag branch-2/3 block-a attention 1x1
        w3f_ref, b3_ref,           # fused block-diag k=3 conv taps (Cb, 3*Ca)
        wab_ref, bab_ref,          # block-diag branch-2/3 block-b attention 1x1
        ca1w_ref, ca1b_ref,        # channel attention fc1
        ca2w_ref, ca2b_ref,        # channel attention fc2
        saw_ref, sab_ref,          # spatial attention taps (1, 14) / bias (1, 1)
        o_ref,                     # (C, Lp) output block (also used as cat slab)
        *, seq_len, c1, c2b, c3b):
    L = seq_len
    Lp = x_ref.shape[-1]

    lane = jax.lax.broadcasted_iota(jnp.int32, (1, Lp), 1)
    valid = lane < L                       # real (non-padded) lanes

    # Hoisted boundary masks for every shift amount we use (d in [-3, 3]).
    masks = {d: (lane + d >= 0) & (lane + d <= L - 1)
             for d in range(-3, 4) if d != 0}

    def shift(v, d):
        """y[:, l] = v[:, l + d] inside the length-L segment, 0 outside."""
        if d == 0:
            return v
        r = pltpu.roll(v, shift=(-d) % Lp, axis=1)
        return jnp.where(masks[d], r, 0.0)

    relu = lambda v: jnp.maximum(v, 0.0)
    dot = lambda a, b: jnp.dot(a, b, preferred_element_type=jnp.float32)

    x = x_ref[...]

    # ---- fused stem: branch-1 conv + branch-2/3 block-a convs (one matmul) ----
    stem = dot(wstem_ref[...], x) + bstem_ref[...]
    o_ref[0:c1, :] = relu(stem[0:c1, :])              # branch 1: conv1x1 + ReLU

    # ---- branches 2 & 3, fused block-diagonally ----
    a = stem[c1:, :]                                   # block-a conv output (Ca, Lp)
    a = relu(a * jax.nn.sigmoid(dot(waa_ref[...], a) + baa_ref[...]))
    # k=3 / padding=1 conv: one fused matmul on the stacked shifted slab
    a3 = jnp.concatenate([shift(a, -1), a, shift(a, 1)], axis=0)   # (3*Ca, Lp)
    b = dot(w3f_ref[...], a3) + b3_ref[...]
    b = relu(b * jax.nn.sigmoid(dot(wab_ref[...], b) + bab_ref[...]))
    # (the module's trailing nn.ReLU on p2/p3 is a no-op on ReLU output -> dropped)
    o_ref[c1:c1 + c2b + c3b, :] = b

    # ---- branch 4: maxpool(3, stride=1, pad=1) -> conv1x1 -> ReLU ----
    x_lm1 = jnp.where(masks[-1], pltpu.roll(x, shift=1, axis=1), NEG_INF)
    x_lp1 = jnp.where(masks[1], pltpu.roll(x, shift=Lp - 1, axis=1), NEG_INF)
    mp = jnp.maximum(jnp.maximum(x_lm1, x), x_lp1)
    o_ref[c1 + c2b + c3b:, :] = relu(dot(wp4_ref[...], mp) + bp4_ref[...])

    cat = o_ref[...]                                   # (C, Lp) concatenated branches

    # ---- channel attention: one batch segment per block -> plain reductions ----
    avg_col = jnp.sum(jnp.where(valid, cat, 0.0), axis=1, keepdims=True) * (1.0 / L)
    max_col = jnp.max(jnp.where(valid, cat, NEG_INF), axis=1, keepdims=True)
    pooled = jnp.concatenate([avg_col, max_col], axis=1)           # (C, 2)
    h = relu(dot(ca1w_ref[...], pooled) + ca1b_ref[...])
    z = dot(ca2w_ref[...], h) + ca2b_ref[...]
    ca = jax.nn.sigmoid(z[:, 0:1] + z[:, 1:2])                     # (C, 1)
    out1 = ca * cat                                                # column broadcast

    # ---- spatial attention: k=7 conv as one (1,14) x (14,Lp) matmul ----
    avg_s = jnp.mean(out1, axis=0, keepdims=True)                  # (1, Lp)
    max_s = jnp.max(out1, axis=0, keepdims=True)
    two = jnp.concatenate([avg_s, max_s], axis=0)                  # (2, Lp)
    taps = jnp.concatenate([shift(two, t - 3) for t in range(7)], axis=0)  # (14, Lp)
    sconv = dot(saw_ref[...], taps) + sab_ref[...]                 # (1, Lp)

    o_ref[...] = (jax.nn.sigmoid(sconv) * out1).astype(o_ref.dtype)


# ---------------------------------------------------------------------------
# parameter packing (PyTorch layout -> fused kernel operands)
# ---------------------------------------------------------------------------
def _pack_params(params):
    (p1_w, p1_b,
     p2a_w, p2a_b, p2a_aw, p2a_ab, p2b_w, p2b_b, p2b_aw, p2b_ab,
     p3a_w, p3a_b, p3a_aw, p3a_ab, p3b_w, p3b_b, p3b_aw, p3b_ab,
     p4_w, p4_b,
     ca1_w, ca1_b, ca2_w, ca2_b,
     sa_w, sa_b) = params

    w1 = lambda w: w[:, :, 0]                 # (Co, Ci, 1) -> (Co, Ci)
    col = lambda b: b.reshape(-1, 1)          # (Co,)       -> (Co, 1)
    bd = jax.scipy.linalg.block_diag

    wstem = jnp.concatenate([w1(p1_w), w1(p2a_w), w1(p3a_w)], axis=0)
    bstem = jnp.concatenate([col(p1_b), col(p2a_b), col(p3a_b)], axis=0)
    waa = bd(w1(p2a_aw), w1(p3a_aw))
    baa = jnp.concatenate([col(p2a_ab), col(p3a_ab)], axis=0)
    # fused k=3 taps: (Cb, 3*Ca), tap order matches [shift(-1); identity; shift(+1)]
    w3f = jnp.concatenate(
        [bd(p2b_w[:, :, t], p3b_w[:, :, t]) for t in range(3)], axis=1)
    b3 = jnp.concatenate([col(p2b_b), col(p3b_b)], axis=0)
    wab = bd(w1(p2b_aw), w1(p3b_aw))
    bab = jnp.concatenate([col(p2b_ab), col(p3b_ab)], axis=0)
    # spatial taps packed in [t0_avg, t0_max, t1_avg, t1_max, ...] order
    saw = jnp.transpose(sa_w[0], (1, 0)).reshape(1, 14)
    sab = sa_b.reshape(1, 1)

    return (wstem, bstem, w1(p4_w), col(p4_b), waa, baa, w3f, b3, wab, bab,
            w1(ca1_w), col(ca1_b), w1(ca2_w), col(ca2_b), saw, sab)


# ---------------------------------------------------------------------------
# wrapper
# ---------------------------------------------------------------------------
def inception_with_attention(x, params, c1, c2, c3, c4):
    N, Cin, L = x.shape
    C = c1 + c2[1] + c3[1] + c4

    packed = _pack_params(params)

    # One batch segment per grid step: pad L up to a lane multiple.
    Lp = ((L + LANES - 1) // LANES) * LANES
    xp = jnp.pad(x, ((0, 0), (0, 0), (0, Lp - L)))        # (N, Cin, Lp)

    kernel = functools.partial(inception_kernel, seq_len=L,
                               c1=c1, c2b=c2[1], c3b=c3[1])

    # Weights: full-shape blocks with constant index maps -> stay resident in
    # VMEM across grid steps (no re-DMA per batch element).
    def wspec(a):
        return pl.BlockSpec(a.shape, lambda i: (0, 0))

    in_specs = ([pl.BlockSpec((None, Cin, Lp), lambda i: (i, 0, 0))]
                + [wspec(a) for a in packed])
    out_specs = pl.BlockSpec((None, C, Lp), lambda i: (i, 0, 0))

    out = pl.pallas_call(
        kernel,
        out_shape=jax.ShapeDtypeStruct((N, C, Lp), jnp.float32),
        grid_spec=pltpu.PrefetchScalarGridSpec(
            num_scalar_prefetch=0,
            grid=(N,),
            in_specs=in_specs,
            out_specs=out_specs,
        ),
        compiler_params=pltpu.CompilerParams(
            dimension_semantics=("parallel",),       # batch split across TCs on v7x
            vmem_limit_bytes=48 * 1024 * 1024),      # safe on v5e/v6e/v7x
    )(xp, *packed)

    # Drop lane padding and apply nn.Flatten (row-major over (C, L)).
    return out[:, :, :L].reshape(N, C * L)


# ---------------------------------------------------------------------------
# parameters (PyTorch-layout shapes) and pure-JAX reference for verification
# ---------------------------------------------------------------------------
def init_params(key, in_channels, c1, c2, c3, c4, reduction=16):
    C = c1 + c2[1] + c3[1] + c4
    Cr = C // reduction
    assert Cr >= 1, "total channels must be >= reduction"
    shapes = [
        (c1, in_channels, 1), (c1,),
        (c2[0], in_channels, 1), (c2[0],), (c2[0], c2[0], 1), (c2[0],),
        (c2[1], c2[0], 3), (c2[1],), (c2[1], c2[1], 1), (c2[1],),
        (c3[0], in_channels, 1), (c3[0],), (c3[0], c3[0], 1), (c3[0],),
        (c3[1], c3[0], 3), (c3[1],), (c3[1], c3[1], 1), (c3[1],),
        (c4, in_channels, 1), (c4,),
        (Cr, C, 1), (Cr,), (C, Cr, 1), (C,),
        (1, 2, 7), (1,),
    ]
    keys = jax.random.split(key, len(shapes))
    params = tuple(0.1 * jax.random.normal(k, s, dtype=jnp.float32)
                   for k, s in zip(keys, shapes))
    return params, C


def reference_forward(x, params):
    (p1_w, p1_b,
     p2a_w, p2a_b, p2a_aw, p2a_ab, p2b_w, p2b_b, p2b_aw, p2b_ab,
     p3a_w, p3a_b, p3a_aw, p3a_ab, p3b_w, p3b_b, p3b_aw, p3b_ab,
     p4_w, p4_b, ca1_w, ca1_b, ca2_w, ca2_b, sa_w, sa_b) = params

    def conv1d(v, w, b, pad=0):
        y = jax.lax.conv_general_dilated(
            v, w, window_strides=(1,), padding=[(pad, pad)],
            dimension_numbers=("NCH", "OIH", "NCH"),
            precision=jax.lax.Precision.HIGHEST)
        return y + b[None, :, None]

    def attn_block(v, cw, cb, aw, ab, pad):
        out = conv1d(v, cw, cb, pad)
        att = jax.nn.sigmoid(conv1d(out, aw, ab))
        return jax.nn.relu(out * att)

    p1 = jax.nn.relu(conv1d(x, p1_w, p1_b))
    p2 = jax.nn.relu(attn_block(attn_block(x, p2a_w, p2a_b, p2a_aw, p2a_ab, 0),
                                p2b_w, p2b_b, p2b_aw, p2b_ab, 1))
    p3 = jax.nn.relu(attn_block(attn_block(x, p3a_w, p3a_b, p3a_aw, p3a_ab, 0),
                                p3b_w, p3b_b, p3b_aw, p3b_ab, 1))
    mp = jax.lax.reduce_window(x, -jnp.inf, jax.lax.max,
                               (1, 1, 3), (1, 1, 1), [(0, 0), (0, 0), (1, 1)])
    p4 = jax.nn.relu(conv1d(mp, p4_w, p4_b))
    out = jnp.concatenate([p1, p2, p3, p4], axis=1)

    def mlp(v):
        h = jax.nn.relu(conv1d(v, ca1_w, ca1_b))
        return conv1d(h, ca2_w, ca2_b)

    avg = jnp.mean(out, axis=2, keepdims=True)
    mx = jnp.max(out, axis=2, keepdims=True)
    out = jax.nn.sigmoid(mlp(avg) + mlp(mx)) * out

    avg_s = jnp.mean(out, axis=1, keepdims=True)
    max_s = jnp.max(out, axis=1, keepdims=True)
    two = jnp.concatenate([avg_s, max_s], axis=1)
    out = jax.nn.sigmoid(conv1d(two, sa_w, sa_b, pad=3)) * out
    return out.reshape(out.shape[0], -1)


if __name__ == "__main__":
    key = jax.random.PRNGKey(0)
    kx, kw = jax.random.split(key)

    # small, module-consistent shapes
    N, Cin, L = 2, 4, 16
    c1, c2, c3, c4 = 8, (4, 8), (4, 8), 8          # total channels C = 32

    params, C = init_params(kw, Cin, c1, c2, c3, c4)
    x = jax.random.normal(kx, (N, Cin, L), dtype=jnp.float32)

    fwd = jax.jit(lambda xx, pp: inception_with_attention(xx, pp, c1, c2, c3, c4))
    out = jax.block_until_ready(fwd(x, params))
    assert out.shape == (N, C * L) and out.dtype == jnp.float32

    ref = jax.block_until_ready(reference_forward(x, params))
    np.testing.assert_allclose(np.asarray(out), np.asarray(ref),
                               rtol=2e-3, atol=2e-3)
    print("KERNEL_OK")
</pallas_src>

<mosaic_0001>
module attributes {stable_mosaic.version = 11 : i64} {
  func.func @inception_kernel(%arg0: i32, %arg1: memref<1x4x128xf32, #tpu.memory_space<vmem>>, %arg2: memref<16x4xf32, #tpu.memory_space<vmem>>, %arg3: memref<16x1xf32, #tpu.memory_space<vmem>>, %arg4: memref<8x4xf32, #tpu.memory_space<vmem>>, %arg5: memref<8x1xf32, #tpu.memory_space<vmem>>, %arg6: memref<8x8xf32, #tpu.memory_space<vmem>>, %arg7: memref<8x1xf32, #tpu.memory_space<vmem>>, %arg8: memref<16x24xf32, #tpu.memory_space<vmem>>, %arg9: memref<16x1xf32, #tpu.memory_space<vmem>>, %arg10: memref<16x16xf32, #tpu.memory_space<vmem>>, %arg11: memref<16x1xf32, #tpu.memory_space<vmem>>, %arg12: memref<2x32xf32, #tpu.memory_space<vmem>>, %arg13: memref<2x1xf32, #tpu.memory_space<vmem>>, %arg14: memref<32x2xf32, #tpu.memory_space<vmem>>, %arg15: memref<32x1xf32, #tpu.memory_space<vmem>>, %arg16: memref<1x14xf32, #tpu.memory_space<vmem>>, %arg17: memref<1x1xf32, #tpu.memory_space<vmem>>, %arg18: memref<1x32x128xf32, #tpu.memory_space<vmem>>) attributes {dimension_semantics = [#tpu.dimension_semantics<parallel>], iteration_bounds = array<i64: 2>, scalar_prefetch = 0 : i64, scratch_operands = 0 : i64, tpu.core_type = #tpu.core_type<tc>, window_params = [{transform_indices = @transform_0, window_bounds = array<i64: 1, 4, 128>}, {pipeline_mode = #tpu.pipeline_mode<synchronous>, transform_indices = @transform_1, window_bounds = array<i64: 16, 4>}, {pipeline_mode = #tpu.pipeline_mode<synchronous>, transform_indices = @transform_2, window_bounds = array<i64: 16, 1>}, {pipeline_mode = #tpu.pipeline_mode<synchronous>, transform_indices = @transform_3, window_bounds = array<i64: 8, 4>}, {pipeline_mode = #tpu.pipeline_mode<synchronous>, transform_indices = @transform_4, window_bounds = array<i64: 8, 1>}, {pipeline_mode = #tpu.pipeline_mode<synchronous>, transform_indices = @transform_5, window_bounds = array<i64: 8, 8>}, {pipeline_mode = #tpu.pipeline_mode<synchronous>, transform_indices = @transform_6, window_bounds = array<i64: 8, 1>}, {pipeline_mode = #tpu.pipeline_mode<synchronous>, transform_indices = @transform_7, window_bounds = array<i64: 16, 24>}, {pipeline_mode = #tpu.pipeline_mode<synchronous>, transform_indices = @transform_8, window_bounds = array<i64: 16, 1>}, {pipeline_mode = #tpu.pipeline_mode<synchronous>, transform_indices = @transform_9, window_bounds = array<i64: 16, 16>}, {pipeline_mode = #tpu.pipeline_mode<synchronous>, transform_indices = @transform_10, window_bounds = array<i64: 16, 1>}, {pipeline_mode = #tpu.pipeline_mode<synchronous>, transform_indices = @transform_11, window_bounds = array<i64: 2, 32>}, {pipeline_mode = #tpu.pipeline_mode<synchronous>, transform_indices = @transform_12, window_bounds = array<i64: 2, 1>}, {pipeline_mode = #tpu.pipeline_mode<synchronous>, transform_indices = @transform_13, window_bounds = array<i64: 32, 2>}, {pipeline_mode = #tpu.pipeline_mode<synchronous>, transform_indices = @transform_14, window_bounds = array<i64: 32, 1>}, {pipeline_mode = #tpu.pipeline_mode<synchronous>, transform_indices = @transform_15, window_bounds = array<i64: 1, 14>}, {pipeline_mode = #tpu.pipeline_mode<synchronous>, transform_indices = @transform_16, window_bounds = array<i64: 1, 1>}, {transform_indices = @transform_17, window_bounds = array<i64: 1, 32, 128>}]} {
    %0 = tpu.iota {dimensions = array<i32: 1>} : vector<1x128xi32>
    %c16_i32 = arith.constant 16 : i32
    %1 = vector.broadcast %c16_i32 : i32 to vector<1x128xi32>
    %2 = arith.cmpi slt, %0, %1 : vector<1x128xi32>
    %c-3_i32 = arith.constant -3 : i32
    %3 = vector.broadcast %c-3_i32 : i32 to vector<1x128xi32>
    %4 = arith.addi %0, %3 : vector<1x128xi32>
    %c0_i32 = arith.constant 0 : i32
    %5 = vector.broadcast %c0_i32 : i32 to vector<1x128xi32>
    %6 = arith.cmpi sge, %4, %5 : vector<1x128xi32>
    %c-3_i32_0 = arith.constant -3 : i32
    %7 = vector.broadcast %c-3_i32_0 : i32 to vector<1x128xi32>
    %8 = arith.addi %0, %7 : vector<1x128xi32>
    %c15_i32 = arith.constant 15 : i32
    %9 = vector.broadcast %c15_i32 : i32 to vector<1x128xi32>
    %10 = arith.cmpi sle, %8, %9 : vector<1x128xi32>
    %11 = arith.andi %6, %10 : vector<1x128xi1>
    %c-2_i32 = arith.constant -2 : i32
    %12 = vector.broadcast %c-2_i32 : i32 to vector<1x128xi32>
    %13 = arith.addi %0, %12 : vector<1x128xi32>
    %c0_i32_1 = arith.constant 0 : i32
    %14 = vector.broadcast %c0_i32_1 : i32 to vector<1x128xi32>
    %15 = arith.cmpi sge, %13, %14 : vector<1x128xi32>
    %c-2_i32_2 = arith.constant -2 : i32
    %16 = vector.broadcast %c-2_i32_2 : i32 to vector<1x128xi32>
    %17 = arith.addi %0, %16 : vector<1x128xi32>
    %c15_i32_3 = arith.constant 15 : i32
    %18 = vector.broadcast %c15_i32_3 : i32 to vector<1x128xi32>
    %19 = arith.cmpi sle, %17, %18 : vector<1x128xi32>
    %20 = arith.andi %15, %19 : vector<1x128xi1>
    %c-1_i32 = arith.constant -1 : i32
    %21 = vector.broadcast %c-1_i32 : i32 to vector<1x128xi32>
    %22 = arith.addi %0, %21 : vector<1x128xi32>
    %c0_i32_4 = arith.constant 0 : i32
    %23 = vector.broadcast %c0_i32_4 : i32 to vector<1x128xi32>
    %24 = arith.cmpi sge, %22, %23 : vector<1x128xi32>
    %c-1_i32_5 = arith.constant -1 : i32
    %25 = vector.broadcast %c-1_i32_5 : i32 to vector<1x128xi32>
    %26 = arith.addi %0, %25 : vector<1x128xi32>
    %c15_i32_6 = arith.constant 15 : i32
    %27 = vector.broadcast %c15_i32_6 : i32 to vector<1x128xi32>
    %28 = arith.cmpi sle, %26, %27 : vector<1x128xi32>
    %29 = arith.andi %24, %28 : vector<1x128xi1>
    %c1_i32 = arith.constant 1 : i32
    %30 = vector.broadcast %c1_i32 : i32 to vector<1x128xi32>
    %31 = arith.addi %0, %30 : vector<1x128xi32>
    %c0_i32_7 = arith.constant 0 : i32
    %32 = vector.broadcast %c0_i32_7 : i32 to vector<1x128xi32>
    %33 = arith.cmpi sge, %31, %32 : vector<1x128xi32>
    %c1_i32_8 = arith.constant 1 : i32
    %34 = vector.broadcast %c1_i32_8 : i32 to vector<1x128xi32>
    %35 = arith.addi %0, %34 : vector<1x128xi32>
    %c15_i32_9 = arith.constant 15 : i32
    %36 = vector.broadcast %c15_i32_9 : i32 to vector<1x128xi32>
    %37 = arith.cmpi sle, %35, %36 : vector<1x128xi32>
    %38 = arith.andi %33, %37 : vector<1x128xi1>
    %c2_i32 = arith.constant 2 : i32
    %39 = vector.broadcast %c2_i32 : i32 to vector<1x128xi32>
    %40 = arith.addi %0, %39 : vector<1x128xi32>
    %c0_i32_10 = arith.constant 0 : i32
    %41 = vector.broadcast %c0_i32_10 : i32 to vector<1x128xi32>
    %42 = arith.cmpi sge, %40, %41 : vector<1x128xi32>
    %c2_i32_11 = arith.constant 2 : i32
    %43 = vector.broadcast %c2_i32_11 : i32 to vector<1x128xi32>
    %44 = arith.addi %0, %43 : vector<1x128xi32>
    %c15_i32_12 = arith.constant 15 : i32
    %45 = vector.broadcast %c15_i32_12 : i32 to vector<1x128xi32>
    %46 = arith.cmpi sle, %44, %45 : vector<1x128xi32>
    %47 = arith.andi %42, %46 : vector<1x128xi1>
    %c3_i32 = arith.constant 3 : i32
    %48 = vector.broadcast %c3_i32 : i32 to vector<1x128xi32>
    %49 = arith.addi %0, %48 : vector<1x128xi32>
    %c0_i32_13 = arith.constant 0 : i32
    %50 = vector.broadcast %c0_i32_13 : i32 to vector<1x128xi32>
    %51 = arith.cmpi sge, %49, %50 : vector<1x128xi32>
    %c3_i32_14 = arith.constant 3 : i32
    %52 = vector.broadcast %c3_i32_14 : i32 to vector<1x128xi32>
    %53 = arith.addi %0, %52 : vector<1x128xi32>
    %c15_i32_15 = arith.constant 15 : i32
    %54 = vector.broadcast %c15_i32_15 : i32 to vector<1x128xi32>
    %55 = arith.cmpi sle, %53, %54 : vector<1x128xi32>
    %56 = arith.andi %51, %55 : vector<1x128xi1>
    %c0 = arith.constant 0 : index
    %c0_16 = arith.constant 0 : index
    %c0_17 = arith.constant 0 : index
    %57 = vector.load %arg1[%c0, %c0_16, %c0_17] : memref<1x4x128xf32, #tpu.memory_space<vmem>>, vector<1x4x128xf32>
    %58 = vector.shape_cast %57 : vector<1x4x128xf32> to vector<4x128xf32>
    %c0_18 = arith.constant 0 : index
    %c0_19 = arith.constant 0 : index
    %59 = vector.load %arg2[%c0_18, %c0_19] : memref<16x4xf32, #tpu.memory_space<vmem>>, vector<16x4xf32>
    %cst = arith.constant dense<0.000000e+00> : vector<16x128xf32>
    %60 = tpu.matmul %59, %58, %cst {dimension_numbers = #tpu.dot_dimension_numbers<[1], [0], [0], [1], [0, 0, 1, 1], [], []>} : vector<16x4xf32>, vector<4x128xf32>, vector<16x128xf32> -> vector<16x128xf32>
    %c0_20 = arith.constant 0 : index
    %c0_21 = arith.constant 0 : index
    %61 = vector.load %arg3[%c0_20, %c0_21] : memref<16x1xf32, #tpu.memory_space<vmem>>, vector<16x1xf32>
    %62 = vector.broadcast %61 : vector<16x1xf32> to vector<16x128xf32>
    %63 = arith.addf %60, %62 : vector<16x128xf32>
    %64 = vector.extract_strided_slice %63 {offsets = [0, 0], sizes = [8, 128], strides = [1, 1]} : vector<16x128xf32> to vector<8x128xf32>
    %cst_22 = arith.constant 0.000000e+00 : f32
    %65 = vector.broadcast %cst_22 : f32 to vector<8x128xf32>
    %66 = arith.maximumf %64, %65 : vector<8x128xf32>
    %c0_23 = arith.constant 0 : index
    %c0_24 = arith.constant 0 : index
    %c0_25 = arith.constant 0 : index
    %67 = vector.load %arg18[%c0_23, %c0_24, %c0_25] : memref<1x32x128xf32, #tpu.memory_space<vmem>>, vector<1x8x128xf32>
    %68 = vector.shape_cast %67 : vector<1x8x128xf32> to vector<8x128xf32>
    %69 = vector.shape_cast %66 : vector<8x128xf32> to vector<1x8x128xf32>
    tpu.vector_store %arg18[%c0_23, %c0_24, %c0_25], %69 {strides = array<i32>} : memref<1x32x128xf32, #tpu.memory_space<vmem>>, vector<1x8x128xf32>,
    %70 = vector.extract_strided_slice %63 {offsets = [8, 0], sizes = [8, 128], strides = [1, 1]} : vector<16x128xf32> to vector<8x128xf32>
    %c0_26 = arith.constant 0 : index
    %c0_27 = arith.constant 0 : index
    %71 = vector.load %arg6[%c0_26, %c0_27] : memref<8x8xf32, #tpu.memory_space<vmem>>, vector<8x8xf32>
    %cst_28 = arith.constant dense<0.000000e+00> : vector<8x128xf32>
    %72 = tpu.matmul %71, %70, %cst_28 {dimension_numbers = #tpu.dot_dimension_numbers<[1], [0], [0], [1], [0, 0, 1, 1], [], []>} : vector<8x8xf32>, vector<8x128xf32>, vector<8x128xf32> -> vector<8x128xf32>
    %c0_29 = arith.constant 0 : index
    %c0_30 = arith.constant 0 : index
    %73 = vector.load %arg7[%c0_29, %c0_30] : memref<8x1xf32, #tpu.memory_space<vmem>>, vector<8x1xf32>
    %74 = vector.broadcast %73 : vector<8x1xf32> to vector<8x128xf32>
    %75 = arith.addf %72, %74 : vector<8x128xf32>
    %76 = arith.negf %75 : vector<8x128xf32>
    %77 = math.exp %76 : vector<8x128xf32>
    %cst_31 = arith.constant 1.000000e+00 : f32
    %78 = vector.broadcast %cst_31 : f32 to vector<8x128xf32>
    %79 = arith.addf %78, %77 : vector<8x128xf32>
    %80 = arith.divf %78, %79 : vector<8x128xf32>
    %81 = arith.mulf %70, %80 : vector<8x128xf32>
    %cst_32 = arith.constant 0.000000e+00 : f32
    %82 = vector.broadcast %cst_32 : f32 to vector<8x128xf32>
    %83 = arith.maximumf %81, %82 : vector<8x128xf32>
    %c1_i32_33 = arith.constant 1 : i32
    %84 = tpu.dynamic_rotate %83 by %c1_i32_33 dim 1 : vector<8x128xf32>, i32 -> vector<8x128xf32>
    %cst_34 = arith.constant 0.000000e+00 : f32
    %85 = vector.shape_cast %29 : vector<1x128xi1> to vector<1x128xi1>
    %86 = vector.broadcast %85 : vector<1x128xi1> to vector<8x128xi1>
    %87 = vector.broadcast %cst_34 : f32 to vector<8x128xf32>
    %88 = arith.select %86, %84, %87 : vector<8x128xi1>, vector<8x128xf32>
    %c127_i32 = arith.constant 127 : i32
    %89 = tpu.dynamic_rotate %83 by %c127_i32 dim 1 : vector<8x128xf32>, i32 -> vector<8x128xf32>
    %cst_35 = arith.constant 0.000000e+00 : f32
    %90 = vector.shape_cast %38 : vector<1x128xi1> to vector<1x128xi1>
    %91 = vector.broadcast %90 : vector<1x128xi1> to vector<8x128xi1>
    %92 = vector.broadcast %cst_35 : f32 to vector<8x128xf32>
    %93 = arith.select %91, %89, %92 : vector<8x128xi1>, vector<8x128xf32>
    %94 = tpu.concatenate %88, %83, %93 in 0 : vector<8x128xf32>, vector<8x128xf32>, vector<8x128xf32> -> vector<24x128xf32>
    %c0_36 = arith.constant 0 : index
    %c0_37 = arith.constant 0 : index
    %95 = vector.load %arg8[%c0_36, %c0_37] : memref<16x24xf32, #tpu.memory_space<vmem>>, vector<16x24xf32>
    %cst_38 = arith.constant dense<0.000000e+00> : vector<16x128xf32>
    %96 = tpu.matmul %95, %94, %cst_38 {dimension_numbers = #tpu.dot_dimension_numbers<[1], [0], [0], [1], [0, 0, 1, 1], [], []>} : vector<16x24xf32>, vector<24x128xf32>, vector<16x128xf32> -> vector<16x128xf32>
    %c0_39 = arith.constant 0 : index
    %c0_40 = arith.constant 0 : index
    %97 = vector.load %arg9[%c0_39, %c0_40] : memref<16x1xf32, #tpu.memory_space<vmem>>, vector<16x1xf32>
    %98 = vector.broadcast %97 : vector<16x1xf32> to vector<16x128xf32>
    %99 = arith.addf %96, %98 : vector<16x128xf32>
    %c0_41 = arith.constant 0 : index
    %c0_42 = arith.constant 0 : index
    %100 = vector.load %arg10[%c0_41, %c0_42] : memref<16x16xf32, #tpu.memory_space<vmem>>, vector<16x16xf32>
    %cst_43 = arith.constant dense<0.000000e+00> : vector<16x128xf32>
    %101 = tpu.matmul %100, %99, %cst_43 {dimension_numbers = #tpu.dot_dimension_numbers<[1], [0], [0], [1], [0, 0, 1, 1], [], []>} : vector<16x16xf32>, vector<16x128xf32>, vector<16x128xf32> -> vector<16x128xf32>
    %c0_44 = arith.constant 0 : index
    %c0_45 = arith.constant 0 : index
    %102 = vector.load %arg11[%c0_44, %c0_45] : memref<16x1xf32, #tpu.memory_space<vmem>>, vector<16x1xf32>
    %103 = vector.broadcast %102 : vector<16x1xf32> to vector<16x128xf32>
    %104 = arith.addf %101, %103 : vector<16x128xf32>
    %105 = arith.negf %104 : vector<16x128xf32>
    %106 = math.exp %105 : vector<16x128xf32>
    %cst_46 = arith.constant 1.000000e+00 : f32
    %107 = vector.broadcast %cst_46 : f32 to vector<16x128xf32>
    %108 = arith.addf %107, %106 : vector<16x128xf32>
    %109 = arith.divf %107, %108 : vector<16x128xf32>
    %110 = arith.mulf %99, %109 : vector<16x128xf32>
    %cst_47 = arith.constant 0.000000e+00 : f32
    %111 = vector.broadcast %cst_47 : f32 to vector<16x128xf32>
    %112 = arith.maximumf %110, %111 : vector<16x128xf32>
    %c0_48 = arith.constant 0 : index
    %c8 = arith.constant 8 : index
    %c0_49 = arith.constant 0 : index
    %113 = vector.load %arg18[%c0_48, %c8, %c0_49] : memref<1x32x128xf32, #tpu.memory_space<vmem>>, vector<1x16x128xf32>
    %114 = vector.shape_cast %113 : vector<1x16x128xf32> to vector<16x128xf32>
    %115 = vector.shape_cast %112 : vector<16x128xf32> to vector<1x16x128xf32>
    tpu.vector_store %arg18[%c0_48, %c8, %c0_49], %115 {strides = array<i32>} : memref<1x32x128xf32, #tpu.memory_space<vmem>>, vector<1x16x128xf32>,
    %c1_i32_50 = arith.constant 1 : i32
    %116 = tpu.dynamic_rotate %58 by %c1_i32_50 dim 1 : vector<4x128xf32>, i32 -> vector<4x128xf32>
    %cst_51 = arith.constant -1.000000e+30 : f32
    %117 = vector.shape_cast %29 : vector<1x128xi1> to vector<1x128xi1>
    %118 = vector.broadcast %117 : vector<1x128xi1> to vector<4x128xi1>
    %119 = vector.broadcast %cst_51 : f32 to vector<4x128xf32>
    %120 = arith.select %118, %116, %119 : vector<4x128xi1>, vector<4x128xf32>
    %c127_i32_52 = arith.constant 127 : i32
    %121 = tpu.dynamic_rotate %58 by %c127_i32_52 dim 1 : vector<4x128xf32>, i32 -> vector<4x128xf32>
    %cst_53 = arith.constant -1.000000e+30 : f32
    %122 = vector.shape_cast %38 : vector<1x128xi1> to vector<1x128xi1>
    %123 = vector.broadcast %122 : vector<1x128xi1> to vector<4x128xi1>
    %124 = vector.broadcast %cst_53 : f32 to vector<4x128xf32>
    %125 = arith.select %123, %121, %124 : vector<4x128xi1>, vector<4x128xf32>
    %126 = arith.maximumf %120, %58 : vector<4x128xf32>
    %127 = arith.maximumf %126, %125 : vector<4x128xf32>
    %c0_54 = arith.constant 0 : index
    %c0_55 = arith.constant 0 : index
    %128 = vector.load %arg4[%c0_54, %c0_55] : memref<8x4xf32, #tpu.memory_space<vmem>>, vector<8x4xf32>
    %cst_56 = arith.constant dense<0.000000e+00> : vector<8x128xf32>
    %129 = tpu.matmul %128, %127, %cst_56 {dimension_numbers = #tpu.dot_dimension_numbers<[1], [0], [0], [1], [0, 0, 1, 1], [], []>} : vector<8x4xf32>, vector<4x128xf32>, vector<8x128xf32> -> vector<8x128xf32>
    %c0_57 = arith.constant 0 : index
    %c0_58 = arith.constant 0 : index
    %130 = vector.load %arg5[%c0_57, %c0_58] : memref<8x1xf32, #tpu.memory_space<vmem>>, vector<8x1xf32>
    %131 = vector.broadcast %130 : vector<8x1xf32> to vector<8x128xf32>
    %132 = arith.addf %129, %131 : vector<8x128xf32>
    %cst_59 = arith.constant 0.000000e+00 : f32
    %133 = vector.broadcast %cst_59 : f32 to vector<8x128xf32>
    %134 = arith.maximumf %132, %133 : vector<8x128xf32>
    %c0_60 = arith.constant 0 : index
    %c24 = arith.constant 24 : index
    %c0_61 = arith.constant 0 : index
    %135 = vector.load %arg18[%c0_60, %c24, %c0_61] : memref<1x32x128xf32, #tpu.memory_space<vmem>>, vector<1x8x128xf32>
    %136 = vector.shape_cast %135 : vector<1x8x128xf32> to vector<8x128xf32>
    %137 = vector.shape_cast %134 : vector<8x128xf32> to vector<1x8x128xf32>
    tpu.vector_store %arg18[%c0_60, %c24, %c0_61], %137 {strides = array<i32>} : memref<1x32x128xf32, #tpu.memory_space<vmem>>, vector<1x8x128xf32>,
    %c0_62 = arith.constant 0 : index
    %c0_63 = arith.constant 0 : index
    %c0_64 = arith.constant 0 : index
    %138 = vector.load %arg18[%c0_62, %c0_63, %c0_64] : memref<1x32x128xf32, #tpu.memory_space<vmem>>, vector<1x32x128xf32>
    %139 = vector.shape_cast %138 : vector<1x32x128xf32> to vector<32x128xf32>
    %cst_65 = arith.constant 0.000000e+00 : f32
    %140 = vector.shape_cast %2 : vector<1x128xi1> to vector<1x128xi1>
    %141 = vector.broadcast %140 : vector<1x128xi1> to vector<32x128xi1>
    %142 = vector.broadcast %cst_65 : f32 to vector<32x128xf32>
    %143 = arith.select %141, %139, %142 : vector<32x128xi1>, vector<32x128xf32>
    %cst_66 = arith.constant dense<0.000000e+00> : vector<32xf32>
    %144 = vector.multi_reduction <add>, %143, %cst_66 [1] : vector<32x128xf32> to vector<32xf32>
    %145 = vector.shape_cast %144 : vector<32xf32> to vector<32x1xf32>
    %cst_67 = arith.constant 6.250000e-02 : f32
    %146 = vector.broadcast %cst_67 : f32 to vector<32x1xf32>
    %147 = arith.mulf %145, %146 : vector<32x1xf32>
    %cst_68 = arith.constant -1.000000e+30 : f32
    %148 = vector.shape_cast %2 : vector<1x128xi1> to vector<1x128xi1>
    %149 = vector.broadcast %148 : vector<1x128xi1> to vector<32x128xi1>
    %150 = vector.broadcast %cst_68 : f32 to vector<32x128xf32>
    %151 = arith.select %149, %139, %150 : vector<32x128xi1>, vector<32x128xf32>
    %cst_69 = arith.constant dense<0xFF800000> : vector<32xf32>
    %152 = vector.multi_reduction <maximumf>, %151, %cst_69 [1] : vector<32x128xf32> to vector<32xf32>
    %153 = vector.shape_cast %152 : vector<32xf32> to vector<32x1xf32>
    %154 = tpu.concatenate %147, %153 in 1 : vector<32x1xf32>, vector<32x1xf32> -> vector<32x2xf32>
    %c0_70 = arith.constant 0 : index
    %c0_71 = arith.constant 0 : index
    %155 = vector.load %arg12[%c0_70, %c0_71] : memref<2x32xf32, #tpu.memory_space<vmem>>, vector<2x32xf32>
    %cst_72 = arith.constant dense<0.000000e+00> : vector<2x2xf32>
    %156 = tpu.matmul %155, %154, %cst_72 {dimension_numbers = #tpu.dot_dimension_numbers<[1], [0], [0], [1], [0, 0, 1, 1], [], []>} : vector<2x32xf32>, vector<32x2xf32>, vector<2x2xf32> -> vector<2x2xf32>
    %c0_73 = arith.constant 0 : index
    %c0_74 = arith.constant 0 : index
    %157 = vector.load %arg13[%c0_73, %c0_74] : memref<2x1xf32, #tpu.memory_space<vmem>>, vector<2x1xf32>
    %158 = vector.broadcast %157 : vector<2x1xf32> to vector<2x2xf32>
    %159 = arith.addf %156, %158 : vector<2x2xf32>
    %cst_75 = arith.constant 0.000000e+00 : f32
    %160 = vector.broadcast %cst_75 : f32 to vector<2x2xf32>
    %161 = arith.maximumf %159, %160 : vector<2x2xf32>
    %c0_76 = arith.constant 0 : index
    %c0_77 = arith.constant 0 : index
    %162 = vector.load %arg14[%c0_76, %c0_77] : memref<32x2xf32, #tpu.memory_space<vmem>>, vector<32x2xf32>
    %cst_78 = arith.constant dense<0.000000e+00> : vector<32x2xf32>
    %163 = tpu.matmul %162, %161, %cst_78 {dimension_numbers = #tpu.dot_dimension_numbers<[1], [0], [0], [1], [0, 0, 1, 1], [], []>} : vector<32x2xf32>, vector<2x2xf32>, vector<32x2xf32> -> vector<32x2xf32>
    %c0_79 = arith.constant 0 : index
    %c0_80 = arith.constant 0 : index
    %164 = vector.load %arg15[%c0_79, %c0_80] : memref<32x1xf32, #tpu.memory_space<vmem>>, vector<32x1xf32>
    %165 = vector.broadcast %164 : vector<32x1xf32> to vector<32x2xf32>
    %166 = arith.addf %163, %165 : vector<32x2xf32>
    %167 = vector.extract_strided_slice %166 {offsets = [0, 0], sizes = [32, 1], strides = [1, 1]} : vector<32x2xf32> to vector<32x1xf32>
    %168 = vector.extract_strided_slice %166 {offsets = [0, 1], sizes = [32, 1], strides = [1, 1]} : vector<32x2xf32> to vector<32x1xf32>
    %169 = arith.addf %167, %168 : vector<32x1xf32>
    %170 = arith.negf %169 : vector<32x1xf32>
    %171 = math.exp %170 : vector<32x1xf32>
    %cst_81 = arith.constant 1.000000e+00 : f32
    %172 = vector.broadcast %cst_81 : f32 to vector<32x1xf32>
    %173 = arith.addf %172, %171 : vector<32x1xf32>
    %174 = arith.divf %172, %173 : vector<32x1xf32>
    %175 = vector.broadcast %174 : vector<32x1xf32> to vector<32x128xf32>
    %176 = arith.mulf %175, %139 : vector<32x128xf32>
    %cst_82 = arith.constant dense<0.000000e+00> : vector<128xf32>
    %177 = vector.multi_reduction <add>, %176, %cst_82 [0] : vector<32x128xf32> to vector<128xf32>
    %178 = vector.shape_cast %177 : vector<128xf32> to vector<1x128xf32>
    %cst_83 = arith.constant 3.200000e+01 : f32
    %179 = vector.broadcast %cst_83 : f32 to vector<1x128xf32>
    %180 = arith.divf %178, %179 : vector<1x128xf32>
    %cst_84 = arith.constant dense<0xFF800000> : vector<128xf32>
    %181 = vector.multi_reduction <maximumf>, %176, %cst_84 [0] : vector<32x128xf32> to vector<128xf32>
    %182 = vector.shape_cast %181 : vector<128xf32> to vector<1x128xf32>
    %183 = tpu.concatenate %180, %182 in 0 : vector<1x128xf32>, vector<1x128xf32> -> vector<2x128xf32>
    %c3_i32_85 = arith.constant 3 : i32
    %184 = tpu.dynamic_rotate %183 by %c3_i32_85 dim 1 : vector<2x128xf32>, i32 -> vector<2x128xf32>
    %cst_86 = arith.constant 0.000000e+00 : f32
    %185 = vector.shape_cast %11 : vector<1x128xi1> to vector<1x128xi1>
    %186 = vector.broadcast %185 : vector<1x128xi1> to vector<2x128xi1>
    %187 = vector.broadcast %cst_86 : f32 to vector<2x128xf32>
    %188 = arith.select %186, %184, %187 : vector<2x128xi1>, vector<2x128xf32>
    %c2_i32_87 = arith.constant 2 : i32
    %189 = tpu.dynamic_rotate %183 by %c2_i32_87 dim 1 : vector<2x128xf32>, i32 -> vector<2x128xf32>
    %cst_88 = arith.constant 0.000000e+00 : f32
    %190 = vector.shape_cast %20 : vector<1x128xi1> to vector<1x128xi1>
    %191 = vector.broadcast %190 : vector<1x128xi1> to vector<2x128xi1>
    %192 = vector.broadcast %cst_88 : f32 to vector<2x128xf32>
    %193 = arith.select %191, %189, %192 : vector<2x128xi1>, vector<2x128xf32>
    %c1_i32_89 = arith.constant 1 : i32
    %194 = tpu.dynamic_rotate %183 by %c1_i32_89 dim 1 : vector<2x128xf32>, i32 -> vector<2x128xf32>
    %cst_90 = arith.constant 0.000000e+00 : f32
    %195 = vector.shape_cast %29 : vector<1x128xi1> to vector<1x128xi1>
    %196 = vector.broadcast %195 : vector<1x128xi1> to vector<2x128xi1>
    %197 = vector.broadcast %cst_90 : f32 to vector<2x128xf32>
    %198 = arith.select %196, %194, %197 : vector<2x128xi1>, vector<2x128xf32>
    %c127_i32_91 = arith.constant 127 : i32
    %199 = tpu.dynamic_rotate %183 by %c127_i32_91 dim 1 : vector<2x128xf32>, i32 -> vector<2x128xf32>
    %cst_92 = arith.constant 0.000000e+00 : f32
    %200 = vector.shape_cast %38 : vector<1x128xi1> to vector<1x128xi1>
    %201 = vector.broadcast %200 : vector<1x128xi1> to vector<2x128xi1>
    %202 = vector.broadcast %cst_92 : f32 to vector<2x128xf32>
    %203 = arith.select %201, %199, %202 : vector<2x128xi1>, vector<2x128xf32>
    %c126_i32 = arith.constant 126 : i32
    %204 = tpu.dynamic_rotate %183 by %c126_i32 dim 1 : vector<2x128xf32>, i32 -> vector<2x128xf32>
    %cst_93 = arith.constant 0.000000e+00 : f32
    %205 = vector.shape_cast %47 : vector<1x128xi1> to vector<1x128xi1>
    %206 = vector.broadcast %205 : vector<1x128xi1> to vector<2x128xi1>
    %207 = vector.broadcast %cst_93 : f32 to vector<2x128xf32>
    %208 = arith.select %206, %204, %207 : vector<2x128xi1>, vector<2x128xf32>
    %c125_i32 = arith.constant 125 : i32
    %209 = tpu.dynamic_rotate %183 by %c125_i32 dim 1 : vector<2x128xf32>, i32 -> vector<2x128xf32>
    %cst_94 = arith.constant 0.000000e+00 : f32
    %210 = vector.shape_cast %56 : vector<1x128xi1> to vector<1x128xi1>
    %211 = vector.broadcast %210 : vector<1x128xi1> to vector<2x128xi1>
    %212 = vector.broadcast %cst_94 : f32 to vector<2x128xf32>
    %213 = arith.select %211, %209, %212 : vector<2x128xi1>, vector<2x128xf32>
    %214 = tpu.concatenate %188, %193, %198, %183, %203, %208, %213 in 0 : vector<2x128xf32>, vector<2x128xf32>, vector<2x128xf32>, vector<2x128xf32>, vector<2x128xf32>, vector<2x128xf32>, vector<2x128xf32> -> vector<14x128xf32>
    %c0_95 = arith.constant 0 : index
    %c0_96 = arith.constant 0 : index
    %215 = vector.load %arg16[%c0_95, %c0_96] : memref<1x14xf32, #tpu.memory_space<vmem>>, vector<1x14xf32>
    %cst_97 = arith.constant dense<0.000000e+00> : vector<1x128xf32>
    %216 = tpu.matmul %215, %214, %cst_97 {dimension_numbers = #tpu.dot_dimension_numbers<[1], [0], [0], [1], [0, 0, 1, 1], [], []>} : vector<1x14xf32>, vector<14x128xf32>, vector<1x128xf32> -> vector<1x128xf32>
    %c0_98 = arith.constant 0 : index
    %c0_99 = arith.constant 0 : index
    %217 = vector.load %arg17[%c0_98, %c0_99] : memref<1x1xf32, #tpu.memory_space<vmem>>, vector<1x1xf32>
    %218 = vector.broadcast %217 : vector<1x1xf32> to vector<1x128xf32>
    %219 = arith.addf %216, %218 : vector<1x128xf32>
    %220 = arith.negf %219 : vector<1x128xf32>
    %221 = math.exp %220 : vector<1x128xf32>
    %cst_100 = arith.constant 1.000000e+00 : f32
    %222 = vector.broadcast %cst_100 : f32 to vector<1x128xf32>
    %223 = arith.addf %222, %221 : vector<1x128xf32>
    %224 = arith.divf %222, %223 : vector<1x128xf32>
    %225 = vector.broadcast %224 : vector<1x128xf32> to vector<32x128xf32>
    %226 = arith.mulf %225, %176 : vector<32x128xf32>
    %c0_101 = arith.constant 0 : index
    %c0_102 = arith.constant 0 : index
    %c0_103 = arith.constant 0 : index
    %227 = vector.load %arg18[%c0_101, %c0_102, %c0_103] : memref<1x32x128xf32, #tpu.memory_space<vmem>>, vector<1x32x128xf32>
    %228 = vector.shape_cast %227 : vector<1x32x128xf32> to vector<32x128xf32>
    %229 = vector.shape_cast %226 : vector<32x128xf32> to vector<1x32x128xf32>
    tpu.vector_store %arg18[%c0_101, %c0_102, %c0_103], %229 {strides = array<i32>} : memref<1x32x128xf32, #tpu.memory_space<vmem>>, vector<1x32x128xf32>,
    return
  }
  func.func @transform_0(%arg0: i32) -> (i32, i32, i32) {
    %c0_i32 = arith.constant 0 : i32
    %c0_i32_0 = arith.constant 0 : i32
    %c0_i32_1 = arith.constant 0 : i32
    return %arg0, %c0_i32, %c0_i32_0 : i32, i32, i32
  }
  func.func @transform_1(%arg0: i32) -> (i32, i32) {
    %c0_i32 = arith.constant 0 : i32
    %c0_i32_0 = arith.constant 0 : i32
    %c0_i32_1 = arith.constant 0 : i32
    return %c0_i32, %c0_i32_0 : i32, i32
  }
  func.func @transform_2(%arg0: i32) -> (i32, i32) {
    %c0_i32 = arith.constant 0 : i32
    %c0_i32_0 = arith.constant 0 : i32
    %c0_i32_1 = arith.constant 0 : i32
    return %c0_i32, %c0_i32_0 : i32, i32
  }
  func.func @transform_3(%arg0: i32) -> (i32, i32) {
    %c0_i32 = arith.constant 0 : i32
    %c0_i32_0 = arith.constant 0 : i32
    %c0_i32_1 = arith.constant 0 : i32
    return %c0_i32, %c0_i32_0 : i32, i32
  }
  func.func @transform_4(%arg0: i32) -> (i32, i32) {
    %c0_i32 = arith.constant 0 : i32
    %c0_i32_0 = arith.constant 0 : i32
    %c0_i32_1 = arith.constant 0 : i32
    return %c0_i32, %c0_i32_0 : i32, i32
  }
  func.func @transform_5(%arg0: i32) -> (i32, i32) {
    %c0_i32 = arith.constant 0 : i32
    %c0_i32_0 = arith.constant 0 : i32
    %c0_i32_1 = arith.constant 0 : i32
    return %c0_i32, %c0_i32_0 : i32, i32
  }
  func.func @transform_6(%arg0: i32) -> (i32, i32) {
    %c0_i32 = arith.constant 0 : i32
    %c0_i32_0 = arith.constant 0 : i32
    %c0_i32_1 = arith.constant 0 : i32
    return %c0_i32, %c0_i32_0 : i32, i32
  }
  func.func @transform_7(%arg0: i32) -> (i32, i32) {
    %c0_i32 = arith.constant 0 : i32
    %c0_i32_0 = arith.constant 0 : i32
    %c0_i32_1 = arith.constant 0 : i32
    return %c0_i32, %c0_i32_0 : i32, i32
  }
  func.func @transform_8(%arg0: i32) -> (i32, i32) {
    %c0_i32 = arith.constant 0 : i32
    %c0_i32_0 = arith.constant 0 : i32
    %c0_i32_1 = arith.constant 0 : i32
    return %c0_i32, %c0_i32_0 : i32, i32
  }
  func.func @transform_9(%arg0: i32) -> (i32, i32) {
    %c0_i32 = arith.constant 0 : i32
    %c0_i32_0 = arith.constant 0 : i32
    %c0_i32_1 = arith.constant 0 : i32
    return %c0_i32, %c0_i32_0 : i32, i32
  }
  func.func @transform_10(%arg0: i32) -> (i32, i32) {
    %c0_i32 = arith.constant 0 : i32
    %c0_i32_0 = arith.constant 0 : i32
    %c0_i32_1 = arith.constant 0 : i32
    return %c0_i32, %c0_i32_0 : i32, i32
  }
  func.func @transform_11(%arg0: i32) -> (i32, i32) {
    %c0_i32 = arith.constant 0 : i32
    %c0_i32_0 = arith.constant 0 : i32
    %c0_i32_1 = arith.constant 0 : i32
    return %c0_i32, %c0_i32_0 : i32, i32
  }
  func.func @transform_12(%arg0: i32) -> (i32, i32) {
    %c0_i32 = arith.constant 0 : i32
    %c0_i32_0 = arith.constant 0 : i32
    %c0_i32_1 = arith.constant 0 : i32
    return %c0_i32, %c0_i32_0 : i32, i32
  }
  func.func @transform_13(%arg0: i32) -> (i32, i32) {
    %c0_i32 = arith.constant 0 : i32
    %c0_i32_0 = arith.constant 0 : i32
    %c0_i32_1 = arith.constant 0 : i32
    return %c0_i32, %c0_i32_0 : i32, i32
  }
  func.func @transform_14(%arg0: i32) -> (i32, i32) {
    %c0_i32 = arith.constant 0 : i32
    %c0_i32_0 = arith.constant 0 : i32
    %c0_i32_1 = arith.constant 0 : i32
    return %c0_i32, %c0_i32_0 : i32, i32
  }
  func.func @transform_15(%arg0: i32) -> (i32, i32) {
    %c0_i32 = arith.constant 0 : i32
    %c0_i32_0 = arith.constant 0 : i32
    %c0_i32_1 = arith.constant 0 : i32
    return %c0_i32, %c0_i32_0 : i32, i32
  }
  func.func @transform_16(%arg0: i32) -> (i32, i32) {
    %c0_i32 = arith.constant 0 : i32
    %c0_i32_0 = arith.constant 0 : i32
    %c0_i32_1 = arith.constant 0 : i32
    return %c0_i32, %c0_i32_0 : i32, i32
  }
  func.func @transform_17(%arg0: i32) -> (i32, i32, i32) {
    %c0_i32 = arith.constant 0 : i32
    %c0_i32_0 = arith.constant 0 : i32
    %c0_i32_1 = arith.constant 0 : i32
    return %arg0, %c0_i32, %c0_i32_0 : i32, i32, i32
  }
}

</mosaic_0001>

<llo_original>
// kernel: _lambda_.1
$region0: #{_lambda_.1}
  #allocation0 [shape = 'u32[]', space=smem, size = 0x4, offset = 0x4, fixed_abs, tag = 'smem constant byte address 0x4 - core index']
  #allocation1 [shape = 'u32[144,128]{1,0:T(1,128)}', space=vmem, size = 0x12000, scoped, tag = 'internal scratch']
  #allocation2 [shape = 'f32[1,1]{1,0:T(1,128)S(1)}', space=vmem, size = 0x200, scoped, tag = 'scoped memory for _lambda_.1']
  %s0 = inlined_call_operand.vmem [shape: f32[2,4,128], index: 0, kind: input, shape index: {}]
  %s1 = inlined_call_operand.vmem [shape: f32[16,4], index: 1, kind: input, shape index: {}]
  %s2 = inlined_call_operand.vmem [shape: f32[16,1], index: 2, kind: input, shape index: {}]
  %s3 = inlined_call_operand.vmem [shape: f32[8,4], index: 3, kind: input, shape index: {}]
  %s4 = inlined_call_operand.vmem [shape: f32[8,1], index: 4, kind: input, shape index: {}]
  %s5 = inlined_call_operand.vmem [shape: f32[8,8], index: 5, kind: input, shape index: {}]
  %s6 = inlined_call_operand.vmem [shape: f32[8,1], index: 6, kind: input, shape index: {}]
  %s7 = inlined_call_operand.vmem [shape: f32[16,24], index: 7, kind: input, shape index: {}]
  %s8 = inlined_call_operand.vmem [shape: f32[16,1], index: 8, kind: input, shape index: {}]
  %s9 = inlined_call_operand.vmem [shape: f32[16,16], index: 9, kind: input, shape index: {}]
  %s10 = inlined_call_operand.vmem [shape: f32[16,1], index: 10, kind: input, shape index: {}]
  %s11 = inlined_call_operand.vmem [shape: f32[2,32], index: 11, kind: input, shape index: {}]
  %s12 = inlined_call_operand.vmem [shape: f32[2,1], index: 12, kind: input, shape index: {}]
  %s13 = inlined_call_operand.vmem [shape: f32[32,2], index: 13, kind: input, shape index: {}]
  %s14 = inlined_call_operand.vmem [shape: f32[32,1], index: 14, kind: input, shape index: {}]
  %s15 = inlined_call_operand.vmem [shape: f32[1,14], index: 15, kind: input, shape index: {}]
  %s16 = inlined_call_operand.<no memory space> [shape: f32[1,1], index: 16, kind: input, shape index: {}]
  %s17 = inlined_call_operand.vmem [shape: f32[2,32,128], index: 17, kind: output, shape index: {}]
  %s18 = sld [smem:[#allocation0]]
  $region101: #{_lambda_.1} parent=0
    _
  %s20 = ssub.s32 1, %s18
  %s21 = scalar_select 0, %s20, %s18
  %v22 = vstv %s16
  %23 = vst [vmem:[#allocation2] sm:$0x1] %v22
  loop: start=0, step=1, limit=4
  $region2: #{_lambda_.1} parent=0 // loop_pre_header
    _
  $region3: #{_lambda_.1} parent=0 // loop_header
    %s25 = sphi 0, %s29
    %p26 = scmp.ge.s32.totalorder %s25, 4
    %s35 = sphi 0, %s37
    %s38 = sphi 0, %s35
    %s39 = sphi 0, %s38
    %s55 = sphi 0, %s39
    %s59 = sphi 0, %s59
    %s61 = sphi 0, %s59
    %s62 = sphi 0, %s61
    %s76 = sphi 0, %s62
    %s80 = sphi 0, %s80
    %s82 = sphi 0, %s80
    %s83 = sphi 0, %s82
    %s97 = sphi 0, %s83
    %s101 = sphi 0, %s101
    %s103 = sphi 0, %s101
    %s104 = sphi 0, %s103
    %s118 = sphi 0, %s104
    %s122 = sphi 0, %s122
    %s124 = sphi 0, %s122
    %s125 = sphi 0, %s124
    %s139 = sphi 0, %s125
    %s143 = sphi 0, %s143
    %s145 = sphi 0, %s143
    %s146 = sphi 0, %s145
    %s160 = sphi 0, %s146
    %s164 = sphi 0, %s164
    %s166 = sphi 0, %s164
    %s167 = sphi 0, %s166
    %s181 = sphi 0, %s167
    %s185 = sphi 0, %s185
    %s187 = sphi 0, %s185
    %s188 = sphi 0, %s187
    %s202 = sphi 0, %s188
    %s206 = sphi 0, %s206
    %s208 = sphi 0, %s206
    %s209 = sphi 0, %s208
    %s223 = sphi 0, %s209
    %s227 = sphi 0, %s227
    %s229 = sphi 0, %s227
    %s230 = sphi 0, %s229
    %s244 = sphi 0, %s230
    %s248 = sphi 0, %s248
    %s250 = sphi 0, %s248
    %s251 = sphi 0, %s250
    %s265 = sphi 0, %s251
    %s269 = sphi 0, %s269
    %s271 = sphi 0, %s269
    %s272 = sphi 0, %s271
    %s286 = sphi 0, %s272
    %s290 = sphi 0, %s290
    %s292 = sphi 0, %s290
    %s293 = sphi 0, %s292
    %s307 = sphi 0, %s293
    %s311 = sphi 0, %s311
    %s313 = sphi 0, %s311
    %s314 = sphi 0, %s313
    %s328 = sphi 0, %s314
    %s332 = sphi 0, %s332
    %s334 = sphi 0, %s332
    %s335 = sphi 0, %s334
    %s349 = sphi 0, %s335
    %s353 = sphi 0, %s353
    %s355 = sphi 0, %s353
    %s356 = sphi 0, %s355
    %s370 = sphi 0, %s356
    %s374 = sphi 0, %s374
    %s376 = sphi 0, %s374
    %s377 = sphi 0, %s376
    %s391 = sphi 0, %s377
    %s397 = sphi 0, %s399
    %s400 = sphi 0, %s397
    %s401 = sphi 0, %s400
    %s417 = sphi 0, %s401
  $region4: #{_lambda_.1} parent=0 // loop_header_branch
    %28 = sbr.rel (%p26) target = $region8
  $region5: #{_lambda_.1} parent=0 // loop_body
    %s30 = ssub.s32 %s25, 1
    %s31 = ssub.s32 %s25, 2
    %s32 = sadd.s32 %s25, 1
    %s33 = ssub.s32 %s25, %s32
    %p34 = scmp.eq.s32.totalorder %s33, 0
    %s36 = sadd.s32 %s35, 1
    %s37 = scalar_select %p34, %s35, %s36
    %p40 = pneg %p34
    %p41 = scmp.eq.s32.totalorder %s25, 1
    %p42 = por %p40, %p41
    %p43 = scmp.ne.s32.totalorder %s35, %s38
    %p44 = scmp.eq.s32.totalorder %s25, 0
    %p45 = por %p43, %p44
    %p46 = scmp.ne.s32.totalorder %s35, %s38
    %p47 = scmp.eq.s32.totalorder %s30, 1
    %p48 = por %p46, %p47
    %p49 = scmp.ne.s32.totalorder %s38, %s39
    %p50 = scmp.eq.s32.totalorder %s30, 0
    %p51 = por %p49, %p50
    %p52 = scmp.ne.s32.totalorder %s38, %s39
    %p53 = scmp.eq.s32.totalorder %s31, 1
    %p54 = por %p52, %p53
    %p56 = scmp.ne.s32.totalorder %s39, %s55
    %p57 = scmp.eq.s32.totalorder %s31, 0
    %p58 = por %p56, %p57
    %s60 = sadd.s32 %s59, 1
    %p63 = scmp.eq.s32.totalorder %s25, 1
    %p64 = scmp.ne.s32.totalorder %s59, %s61
    %p65 = scmp.eq.s32.totalorder %s25, 0
    %p66 = por %p64, %p65
    %p67 = scmp.ne.s32.totalorder %s59, %s61
    %p68 = scmp.eq.s32.totalorder %s30, 1
    %p69 = por %p67, %p68
    %p70 = scmp.ne.s32.totalorder %s61, %s62
    %p71 = scmp.eq.s32.totalorder %s30, 0
    %p72 = por %p70, %p71
    %p73 = scmp.ne.s32.totalorder %s61, %s62
    %p74 = scmp.eq.s32.totalorder %s31, 1
    %p75 = por %p73, %p74
    %p77 = scmp.ne.s32.totalorder %s62, %s76
    %p78 = scmp.eq.s32.totalorder %s31, 0
    %p79 = por %p77, %p78
    %s81 = sadd.s32 %s80, 1
    %p84 = scmp.eq.s32.totalorder %s25, 1
    %p85 = scmp.ne.s32.totalorder %s80, %s82
    %p86 = scmp.eq.s32.totalorder %s25, 0
    %p87 = por %p85, %p86
    %p88 = scmp.ne.s32.totalorder %s80, %s82
    %p89 = scmp.eq.s32.totalorder %s30, 1
    %p90 = por %p88, %p89
    %p91 = scmp.ne.s32.totalorder %s82, %s83
    %p92 = scmp.eq.s32.totalorder %s30, 0
    %p93 = por %p91, %p92
    %p94 = scmp.ne.s32.totalorder %s82, %s83
    %p95 = scmp.eq.s32.totalorder %s31, 1
    %p96 = por %p94, %p95
    %p98 = scmp.ne.s32.totalorder %s83, %s97
    %p99 = scmp.eq.s32.totalorder %s31, 0
    %p100 = por %p98, %p99
    %s102 = sadd.s32 %s101, 1
    %p105 = scmp.eq.s32.totalorder %s25, 1
    %p106 = scmp.ne.s32.totalorder %s101, %s103
    %p107 = scmp.eq.s32.totalorder %s25, 0
    %p108 = por %p106, %p107
    %p109 = scmp.ne.s32.totalorder %s101, %s103
    %p110 = scmp.eq.s32.totalorder %s30, 1
    %p111 = por %p109, %p110
    %p112 = scmp.ne.s32.totalorder %s103, %s104
    %p113 = scmp.eq.s32.totalorder %s30, 0
    %p114 = por %p112, %p113
    %p115 = scmp.ne.s32.totalorder %s103, %s104
    %p116 = scmp.eq.s32.totalorder %s31, 1
    %p117 = por %p115, %p116
    %p119 = scmp.ne.s32.totalorder %s104, %s118
    %p120 = scmp.eq.s32.totalorder %s31, 0
    %p121 = por %p119, %p120
    %s123 = sadd.s32 %s122, 1
    %p126 = scmp.eq.s32.totalorder %s25, 1
    %p127 = scmp.ne.s32.totalorder %s122, %s124
    %p128 = scmp.eq.s32.totalorder %s25, 0
    %p129 = por %p127, %p128
    %p130 = scmp.ne.s32.totalorder %s122, %s124
    %p131 = scmp.eq.s32.totalorder %s30, 1
    %p132 = por %p130, %p131
    %p133 = scmp.ne.s32.totalorder %s124, %s125
    %p134 = scmp.eq.s32.totalorder %s30, 0
    %p135 = por %p133, %p134
    %p136 = scmp.ne.s32.totalorder %s124, %s125
    %p137 = scmp.eq.s32.totalorder %s31, 1
    %p138 = por %p136, %p137
    %p140 = scmp.ne.s32.totalorder %s125, %s139
    %p141 = scmp.eq.s32.totalorder %s31, 0
    %p142 = por %p140, %p141
    %s144 = sadd.s32 %s143, 1
    %p147 = scmp.eq.s32.totalorder %s25, 1
    %p148 = scmp.ne.s32.totalorder %s143, %s145
    %p149 = scmp.eq.s32.totalorder %s25, 0
    %p150 = por %p148, %p149
    %p151 = scmp.ne.s32.totalorder %s143, %s145
    %p152 = scmp.eq.s32.totalorder %s30, 1
    %p153 = por %p151, %p152
    %p154 = scmp.ne.s32.totalorder %s145, %s146
    %p155 = scmp.eq.s32.totalorder %s30, 0
    %p156 = por %p154, %p155
    %p157 = scmp.ne.s32.totalorder %s145, %s146
    %p158 = scmp.eq.s32.totalorder %s31, 1
    %p159 = por %p157, %p158
    %p161 = scmp.ne.s32.totalorder %s146, %s160
    %p162 = scmp.eq.s32.totalorder %s31, 0
    %p163 = por %p161, %p162
    %s165 = sadd.s32 %s164, 1
    %p168 = scmp.eq.s32.totalorder %s25, 1
    %p169 = scmp.ne.s32.totalorder %s164, %s166
    %p170 = scmp.eq.s32.totalorder %s25, 0
    %p171 = por %p169, %p170
    %p172 = scmp.ne.s32.totalorder %s164, %s166
    %p173 = scmp.eq.s32.totalorder %s30, 1
    %p174 = por %p172, %p173
    %p175 = scmp.ne.s32.totalorder %s166, %s167
    %p176 = scmp.eq.s32.totalorder %s30, 0
    %p177 = por %p175, %p176
    %p178 = scmp.ne.s32.totalorder %s166, %s167
    %p179 = scmp.eq.s32.totalorder %s31, 1
    %p180 = por %p178, %p179
    %p182 = scmp.ne.s32.totalorder %s167, %s181
    %p183 = scmp.eq.s32.totalorder %s31, 0
    %p184 = por %p182, %p183
    %s186 = sadd.s32 %s185, 1
    %p189 = scmp.eq.s32.totalorder %s25, 1
    %p190 = scmp.ne.s32.totalorder %s185, %s187
    %p191 = scmp.eq.s32.totalorder %s25, 0
    %p192 = por %p190, %p191
    %p193 = scmp.ne.s32.totalorder %s185, %s187
    %p194 = scmp.eq.s32.totalorder %s30, 1
    %p195 = por %p193, %p194
    %p196 = scmp.ne.s32.totalorder %s187, %s188
    %p197 = scmp.eq.s32.totalorder %s30, 0
    %p198 = por %p196, %p197
    %p199 = scmp.ne.s32.totalorder %s187, %s188
    %p200 = scmp.eq.s32.totalorder %s31, 1
    %p201 = por %p199, %p200
    %p203 = scmp.ne.s32.totalorder %s188, %s202
    %p204 = scmp.eq.s32.totalorder %s31, 0
    %p205 = por %p203, %p204
    %s207 = sadd.s32 %s206, 1
    %p210 = scmp.eq.s32.totalorder %s25, 1
    %p211 = scmp.ne.s32.totalorder %s206, %s208
    %p212 = scmp.eq.s32.totalorder %s25, 0
    %p213 = por %p211, %p212
    %p214 = scmp.ne.s32.totalorder %s206, %s208
    %p215 = scmp.eq.s32.totalorder %s30, 1
    %p216 = por %p214, %p215
    %p217 = scmp.ne.s32.totalorder %s208, %s209
    %p218 = scmp.eq.s32.totalorder %s30, 0
    %p219 = por %p217, %p218
    %p220 = scmp.ne.s32.totalorder %s208, %s209
    %p221 = scmp.eq.s32.totalorder %s31, 1
    %p222 = por %p220, %p221
    %p224 = scmp.ne.s32.totalorder %s209, %s223
    %p225 = scmp.eq.s32.totalorder %s31, 0
    %p226 = por %p224, %p225
    %s228 = sadd.s32 %s227, 1
    %p231 = scmp.eq.s32.totalorder %s25, 1
    %p232 = scmp.ne.s32.totalorder %s227, %s229
    %p233 = scmp.eq.s32.totalorder %s25, 0
    %p234 = por %p232, %p233
    %p235 = scmp.ne.s32.totalorder %s227, %s229
    %p236 = scmp.eq.s32.totalorder %s30, 1
    %p237 = por %p235, %p236
    %p238 = scmp.ne.s32.totalorder %s229, %s230
    %p239 = scmp.eq.s32.totalorder %s30, 0
    %p240 = por %p238, %p239
    %p241 = scmp.ne.s32.totalorder %s229, %s230
    %p242 = scmp.eq.s32.totalorder %s31, 1
    %p243 = por %p241, %p242
    %p245 = scmp.ne.s32.totalorder %s230, %s244
    %p246 = scmp.eq.s32.totalorder %s31, 0
    %p247 = por %p245, %p246
    %s249 = sadd.s32 %s248, 1
    %p252 = scmp.eq.s32.totalorder %s25, 1
    %p253 = scmp.ne.s32.totalorder %s248, %s250
    %p254 = scmp.eq.s32.totalorder %s25, 0
    %p255 = por %p253, %p254
    %p256 = scmp.ne.s32.totalorder %s248, %s250
    %p257 = scmp.eq.s32.totalorder %s30, 1
    %p258 = por %p256, %p257
    %p259 = scmp.ne.s32.totalorder %s250, %s251
    %p260 = scmp.eq.s32.totalorder %s30, 0
    %p261 = por %p259, %p260
    %p262 = scmp.ne.s32.totalorder %s250, %s251
    %p263 = scmp.eq.s32.totalorder %s31, 1
    %p264 = por %p262, %p263
    %p266 = scmp.ne.s32.totalorder %s251, %s265
    %p267 = scmp.eq.s32.totalorder %s31, 0
    %p268 = por %p266, %p267
    %s270 = sadd.s32 %s269, 1
    %p273 = scmp.eq.s32.totalorder %s25, 1
    %p274 = scmp.ne.s32.totalorder %s269, %s271
    %p275 = scmp.eq.s32.totalorder %s25, 0
    %p276 = por %p274, %p275
    %p277 = scmp.ne.s32.totalorder %s269, %s271
    %p278 = scmp.eq.s32.totalorder %s30, 1
    %p279 = por %p277, %p278
    %p280 = scmp.ne.s32.totalorder %s271, %s272
    %p281 = scmp.eq.s32.totalorder %s30, 0
    %p282 = por %p280, %p281
    %p283 = scmp.ne.s32.totalorder %s271, %s272
    %p284 = scmp.eq.s32.totalorder %s31, 1
    %p285 = por %p283, %p284
    %p287 = scmp.ne.s32.totalorder %s272, %s286
    %p288 = scmp.eq.s32.totalorder %s31, 0
    %p289 = por %p287, %p288
    %s291 = sadd.s32 %s290, 1
    %p294 = scmp.eq.s32.totalorder %s25, 1
    %p295 = scmp.ne.s32.totalorder %s290, %s292
    %p296 = scmp.eq.s32.totalorder %s25, 0
    %p297 = por %p295, %p296
    %p298 = scmp.ne.s32.totalorder %s290, %s292
    %p299 = scmp.eq.s32.totalorder %s30, 1
    %p300 = por %p298, %p299
    %p301 = scmp.ne.s32.totalorder %s292, %s293
    %p302 = scmp.eq.s32.totalorder %s30, 0
    %p303 = por %p301, %p302
    %p304 = scmp.ne.s32.totalorder %s292, %s293
    %p305 = scmp.eq.s32.totalorder %s31, 1
    %p306 = por %p304, %p305
    %p308 = scmp.ne.s32.totalorder %s293, %s307
    %p309 = scmp.eq.s32.totalorder %s31, 0
    %p310 = por %p308, %p309
    %s312 = sadd.s32 %s311, 1
    %p315 = scmp.eq.s32.totalorder %s25, 1
    %p316 = scmp.ne.s32.totalorder %s311, %s313
    %p317 = scmp.eq.s32.totalorder %s25, 0
    %p318 = por %p316, %p317
    %p319 = scmp.ne.s32.totalorder %s311, %s313
    %p320 = scmp.eq.s32.totalorder %s30, 1
    %p321 = por %p319, %p320
    %p322 = scmp.ne.s32.totalorder %s313, %s314
    %p323 = scmp.eq.s32.totalorder %s30, 0
    %p324 = por %p322, %p323
    %p325 = scmp.ne.s32.totalorder %s313, %s314
    %p326 = scmp.eq.s32.totalorder %s31, 1
    %p327 = por %p325, %p326
    %p329 = scmp.ne.s32.totalorder %s314, %s328
    %p330 = scmp.eq.s32.totalorder %s31, 0
    %p331 = por %p329, %p330
    %s333 = sadd.s32 %s332, 1
    %p336 = scmp.eq.s32.totalorder %s25, 1
    %p337 = scmp.ne.s32.totalorder %s332, %s334
    %p338 = scmp.eq.s32.totalorder %s25, 0
    %p339 = por %p337, %p338
    %p340 = scmp.ne.s32.totalorder %s332, %s334
    %p341 = scmp.eq.s32.totalorder %s30, 1
    %p342 = por %p340, %p341
    %p343 = scmp.ne.s32.totalorder %s334, %s335
    %p344 = scmp.eq.s32.totalorder %s30, 0
    %p345 = por %p343, %p344
    %p346 = scmp.ne.s32.totalorder %s334, %s335
    %p347 = scmp.eq.s32.totalorder %s31, 1
    %p348 = por %p346, %p347
    %p350 = scmp.ne.s32.totalorder %s335, %s349
    %p351 = scmp.eq.s32.totalorder %s31, 0
    %p352 = por %p350, %p351
    %s354 = sadd.s32 %s353, 1
    %p357 = scmp.eq.s32.totalorder %s25, 1
    %p358 = scmp.ne.s32.totalorder %s353, %s355
    %p359 = scmp.eq.s32.totalorder %s25, 0
    %p360 = por %p358, %p359
    %p361 = scmp.ne.s32.totalorder %s353, %s355
    %p362 = scmp.eq.s32.totalorder %s30, 1
    %p363 = por %p361, %p362
    %p364 = scmp.ne.s32.totalorder %s355, %s356
    %p365 = scmp.eq.s32.totalorder %s30, 0
    %p366 = por %p364, %p365
    %p367 = scmp.ne.s32.totalorder %s355, %s356
    %p368 = scmp.eq.s32.totalorder %s31, 1
    %p369 = por %p367, %p368
    %p371 = scmp.ne.s32.totalorder %s356, %s370
    %p372 = scmp.eq.s32.totalorder %s31, 0
    %p373 = por %p371, %p372
    %s375 = sadd.s32 %s374, 1
    %p378 = scmp.eq.s32.totalorder %s25, 1
    %p379 = scmp.ne.s32.totalorder %s374, %s376
    %p380 = scmp.eq.s32.totalorder %s25, 0
    %p381 = por %p379, %p380
    %p382 = scmp.ne.s32.totalorder %s374, %s376
    %p383 = scmp.eq.s32.totalorder %s30, 1
    %p384 = por %p382, %p383
    %p385 = scmp.ne.s32.totalorder %s376, %s377
    %p386 = scmp.eq.s32.totalorder %s30, 0
    %p387 = por %p385, %p386
    %p388 = scmp.ne.s32.totalorder %s376, %s377
    %p389 = scmp.eq.s32.totalorder %s31, 1
    %p390 = por %p388, %p389
    %p392 = scmp.ne.s32.totalorder %s377, %s391
    %p393 = scmp.eq.s32.totalorder %s31, 0
    %p394 = por %p392, %p393
    %s395 = ssub.s32 %s25, %s32
    %p396 = scmp.eq.s32.totalorder %s395, 0
    %s398 = sadd.s32 %s397, 1
    %s399 = scalar_select %p396, %s397, %s398
    %p402 = pneg %p396
    %p403 = scmp.eq.s32.totalorder %s25, 1
    %p404 = por %p402, %p403
    %p405 = scmp.ne.s32.totalorder %s397, %s400
    %p406 = scmp.eq.s32.totalorder %s25, 0
    %p407 = por %p405, %p406
    %p408 = scmp.ne.s32.totalorder %s397, %s400
    %p409 = scmp.eq.s32.totalorder %s30, 1
    %p410 = por %p408, %p409
    %p411 = scmp.ne.s32.totalorder %s400, %s401
    %p412 = scmp.eq.s32.totalorder %s30, 0
    %p413 = por %p411, %p412
    %p414 = scmp.ne.s32.totalorder %s400, %s401
    %p415 = scmp.eq.s32.totalorder %s31, 1
    %p416 = por %p414, %p415
    %p418 = scmp.ne.s32.totalorder %s401, %s417
    %p419 = scmp.eq.s32.totalorder %s31, 0
    %p420 = por %p418, %p419
    %p421 = scmp.le.s32.totalorder 1, %s25
    %p422 = scmp.lt.s32.totalorder %s25, 3
    %p423 = pnand %p421, %p422
    %p424 = pneg %p423
    // Predicated region
    $region9: #{_lambda_.1} parent=5 // pred_check
      _
    $region10: #{_lambda_.1} parent=5 // pred_check_branch
      %426 = sbr.rel (%p423) target = $region12
    $region11: #{_lambda_.1} parent=5 // pred_region
      %s427 = ssub.s32 %s25, 1
      // Predicated region
      $region13: #{_lambda_.1} parent=11 // pred_check
        %p428 = pneg %p72
      $region14: #{_lambda_.1} parent=11 // pred_check_branch
        %430 = sbr.rel (%p428) target = $region16
      $region15: #{_lambda_.1} parent=11 // pred_region
        _
      $region16: #{_lambda_.1} parent=11 // pred_fallthru
        _
      // Predicated region
      $region17: #{_lambda_.1} parent=11 // pred_check
        %p431 = pneg %p93
      $region18: #{_lambda_.1} parent=11 // pred_check_branch
        %433 = sbr.rel (%p431) target = $region20
      $region19: #{_lambda_.1} parent=11 // pred_region
        _
      $region20: #{_lambda_.1} parent=11 // pred_fallthru
        _
      // Predicated region
      $region21: #{_lambda_.1} parent=11 // pred_check
        %p434 = pneg %p114
      $region22: #{_lambda_.1} parent=11 // pred_check_branch
        %436 = sbr.rel (%p434) target = $region24
      $region23: #{_lambda_.1} parent=11 // pred_region
        _
      $region24: #{_lambda_.1} parent=11 // pred_fallthru
        _
      // Predicated region
      $region25: #{_lambda_.1} parent=11 // pred_check
        %p437 = pneg %p135
      $region26: #{_lambda_.1} parent=11 // pred_check_branch
        %439 = sbr.rel (%p437) target = $region28
      $region27: #{_lambda_.1} parent=11 // pred_region
        _
      $region28: #{_lambda_.1} parent=11 // pred_fallthru
        _
      // Predicated region
      $region29: #{_lambda_.1} parent=11 // pred_check
        %p440 = pneg %p156
      $region30: #{_lambda_.1} parent=11 // pred_check_branch
        %442 = sbr.rel (%p440) target = $region32
      $region31: #{_lambda_.1} parent=11 // pred_region
        _
      $region32: #{_lambda_.1} parent=11 // pred_fallthru
        _
      // Predicated region
      $region33: #{_lambda_.1} parent=11 // pred_check
        %p443 = pneg %p177
      $region34: #{_lambda_.1} parent=11 // pred_check_branch
        %445 = sbr.rel (%p443) target = $region36
      $region35: #{_lambda_.1} parent=11 // pred_region
        _
      $region36: #{_lambda_.1} parent=11 // pred_fallthru
        _
      // Predicated region
      $region37: #{_lambda_.1} parent=11 // pred_check
        %p446 = pneg %p198
      $region38: #{_lambda_.1} parent=11 // pred_check_branch
        %448 = sbr.rel (%p446) target = $region40
      $region39: #{_lambda_.1} parent=11 // pred_region
        _
      $region40: #{_lambda_.1} parent=11 // pred_fallthru
        _
      // Predicated region
      $region41: #{_lambda_.1} parent=11 // pred_check
        %p449 = pneg %p219
      $region42: #{_lambda_.1} parent=11 // pred_check_branch
        %451 = sbr.rel (%p449) target = $region44
      $region43: #{_lambda_.1} parent=11 // pred_region
        _
      $region44: #{_lambda_.1} parent=11 // pred_fallthru
        _
      // Predicated region
      $region45: #{_lambda_.1} parent=11 // pred_check
        %p452 = pneg %p240
      $region46: #{_lambda_.1} parent=11 // pred_check_branch
        %454 = sbr.rel (%p452) target = $region48
      $region47: #{_lambda_.1} parent=11 // pred_region
        _
      $region48: #{_lambda_.1} parent=11 // pred_fallthru
        _
      // Predicated region
      $region49: #{_lambda_.1} parent=11 // pred_check
        %p455 = pneg %p261
      $region50: #{_lambda_.1} parent=11 // pred_check_branch
        %457 = sbr.rel (%p455) target = $region52
      $region51: #{_lambda_.1} parent=11 // pred_region
        _
      $region52: #{_lambda_.1} parent=11 // pred_fallthru
        _
      // Predicated region
      $region53: #{_lambda_.1} parent=11 // pred_check
        %p458 = pneg %p282
      $region54: #{_lambda_.1} parent=11 // pred_check_branch
        %460 = sbr.rel (%p458) target = $region56
      $region55: #{_lambda_.1} parent=11 // pred_region
        _
      $region56: #{_lambda_.1} parent=11 // pred_fallthru
        _
      // Predicated region
      $region57: #{_lambda_.1} parent=11 // pred_check
        %p461 = pneg %p303
      $region58: #{_lambda_.1} parent=11 // pred_check_branch
        %463 = sbr.rel (%p461) target = $region60
      $region59: #{_lambda_.1} parent=11 // pred_region
        _
      $region60: #{_lambda_.1} parent=11 // pred_fallthru
        _
      // Predicated region
      $region61: #{_lambda_.1} parent=11 // pred_check
        %p464 = pneg %p324
      $region62: #{_lambda_.1} parent=11 // pred_check_branch
        %466 = sbr.rel (%p464) target = $region64
      $region63: #{_lambda_.1} parent=11 // pred_region
        _
      $region64: #{_lambda_.1} parent=11 // pred_fallthru
        _
      // Predicated region
      $region65: #{_lambda_.1} parent=11 // pred_check
        %p467 = pneg %p345
      $region66: #{_lambda_.1} parent=11 // pred_check_branch
        %469 = sbr.rel (%p467) target = $region68
      $region67: #{_lambda_.1} parent=11 // pred_region
        _
      $region68: #{_lambda_.1} parent=11 // pred_fallthru
        _
      // Predicated region
      $region69: #{_lambda_.1} parent=11 // pred_check
        %p470 = pneg %p366
      $region70: #{_lambda_.1} parent=11 // pred_check_branch
        %472 = sbr.rel (%p470) target = $region72
      $region71: #{_lambda_.1} parent=11 // pred_region
        _
      $region72: #{_lambda_.1} parent=11 // pred_fallthru
        _
      // Predicated region
      $region73: #{_lambda_.1} parent=11 // pred_check
        %p473 = pneg %p387
      $region74: #{_lambda_.1} parent=11 // pred_check_branch
        %475 = sbr.rel (%p473) target = $region76
      $region75: #{_lambda_.1} parent=11 // pred_region
        _
      $region76: #{_lambda_.1} parent=11 // pred_fallthru
        _
    $region12: #{_lambda_.1} parent=5 // pred_fallthru
      _
    %p476 = scmp.lt.s32.totalorder %s25, 2
    // Predicated region
    $region77: #{_lambda_.1} parent=5 // pred_check
      %p477 = pneg %p476
    $region78: #{_lambda_.1} parent=5 // pred_check_branch
      %479 = sbr.rel (%p477) target = $region80
    $region79: #{_lambda_.1} parent=5 // pred_region
      // Predicated region
      $region81: #{_lambda_.1} parent=79 // pred_check
        %p480 = pneg %p45
      $region82: #{_lambda_.1} parent=79 // pred_check_branch
        %482 = sbr.rel (%p480) target = $region84
      $region83: #{_lambda_.1} parent=79 // pred_region
        %p483 = scmp.lt.s32.totalorder %s25, 1
        %s484 = scalar_select %p483, %s25, 1
        %s485 = smul.addr %s484, 4
        %s486 = scalar_lea.vmem %s0, %s485
      $region84: #{_lambda_.1} parent=79 // pred_fallthru
        _
    $region80: #{_lambda_.1} parent=5 // pred_fallthru
      _
    %p487 = scmp.le.s32.totalorder 1, %s25
    %p488 = scmp.lt.s32.totalorder %s25, 3
    %p489 = pnand %p487, %p488
    %p490 = pneg %p489
    // Predicated region
    $region85: #{_lambda_.1} parent=5 // pred_check
      _
    $region86: #{_lambda_.1} parent=5 // pred_check_branch
      %492 = sbr.rel (%p489) target = $region88
    $region87: #{_lambda_.1} parent=5 // pred_region
      %s493 = ssub.s32 %s25, 1
      %p494 = scmp.lt.s32.totalorder %s30, 1
      %s495 = scalar_select %p494, %s30, 1
      %s496 = smul.addr %s495, 4
      %s497 = scalar_lea.vmem %s0, %s496
      %p498 = pneg %p51
      %p499 = pneg %p48
      %p500 = pneg %p72
      %p501 = pneg %p69
      %p502 = pneg %p93
      %p503 = pneg %p90
      %p504 = pneg %p114
      %p505 = pneg %p111
      %p506 = pneg %p135
      %p507 = pneg %p132
      %p508 = pneg %p156
      %p509 = pneg %p153
      %p510 = pneg %p177
      %p511 = pneg %p174
      %p512 = pneg %p198
      %p513 = pneg %p195
      %p514 = pneg %p219
      %p515 = pneg %p216
      %p516 = pneg %p240
      %p517 = pneg %p237
      %p518 = pneg %p261
      %p519 = pneg %p258
      %p520 = pneg %p282
      %p521 = pneg %p279
      %p522 = pneg %p303
      %p523 = pneg %p300
      %p524 = pneg %p324
      %p525 = pneg %p321
      %p526 = pneg %p345
      %p527 = pneg %p342
      %p528 = pneg %p366
      %p529 = pneg %p363
      %p530 = pneg %p387
      %p531 = pneg %p384
      %p532 = pneg %p413
      %p533 = pneg %p410
      %p534 = scmp.lt.s32.totalorder %s30, 1
      %s535 = scalar_select %p534, %s30, 1
      %s536 = smul.addr %s535, 4
      %s537 = smul.addr %s536, 8
      %s538 = scalar_lea.vmem %s17, %s537
      %p539 = scmp.lt.s32.totalorder %s30, 1
      %s540 = scalar_select %p539, %s30, 1
      %s541 = smul.addr %s540, 4
      %s542 = scalar_lea.vmem %s0, %s541
      %p543 = scmp.lt.s32.totalorder %s30, 1
      %s544 = scalar_select %p543, %s30, 1
      %s545 = smul.addr %s544, 4
      %s546 = smul.addr %s545, 8
      %s547 = scalar_lea.vmem %s17, %s546
      %v548 = vlaneseq
      %v549 = vand.u32 %v548, 127
      %vm550 = vcmp.lt.s32.totalorder %v549, 16
      %v551 = vadd.s32 %v549, 4294967293
      %vm552 = vcmp.ge.s32.totalorder %v551, 0
      %vm553 = vcmp.le.s32.totalorder %v551, 15
      %vm554 = vmand %vm552, %vm553
      %v555 = vadd.s32 %v549, 4294967294
      %vm556 = vcmp.ge.s32.totalorder %v555, 0
      %vm557 = vcmp.le.s32.totalorder %v555, 15
      %vm558 = vmand %vm556, %vm557
      %v559 = vadd.s32 %v549, 4294967295
      %vm560 = vcmp.ge.s32.totalorder %v559, 0
      %vm561 = vcmp.le.s32.totalorder %v559, 15
      %vm562 = vmand %vm560, %vm561
      %v563 = vadd.s32 %v549, 1
      %vm564 = vcmp.ge.s32.totalorder %v563, 0
      %vm565 = vcmp.le.s32.totalorder %v563, 15
      %vm566 = vmand %vm564, %vm565
      %v567 = vadd.s32 %v549, 2
      %vm568 = vcmp.ge.s32.totalorder %v567, 0
      %vm569 = vcmp.le.s32.totalorder %v567, 15
      %vm570 = vmand %vm568, %vm569
      %v571 = vadd.s32 %v549, 3
      %vm572 = vcmp.ge.s32.totalorder %v571, 0
      %vm573 = vcmp.le.s32.totalorder %v571, 15
      %vm574 = vmand %vm572, %vm573
      %v575 = vld [vmem:[%s542] sm:$0xf]
      %v576 = vld [vmem:[%s1] sm:$0xff]
      %v577 = vld [vmem:[%s1 + $0x8] sm:$0xff]
      %v578 = vld [vmem:[%s2] sm:$0xff]
      %v579 = vld [vmem:[%s2 + $0x8] sm:$0xff]
      %581 = vset.pattern.permute.xlu0 0
      %582 = vperm.xlu0 %581, %v578
      %v583 = vpop.permute.xlu0 %582
      %586 = vset.pattern.permute.xlu0 0
      %587 = vperm.xlu0 %586, %v579
      %v588 = vpop.permute.xlu0 %587
      %vm590 = vcmask 31744
      %v592 = vsel %vm590, %v576, 0
      %v595 = vsel %vm590, %v577, 0
      %vm597 = vcmask 1043456
      %v599 = vsel %vm597, %v575, 0
      %601 = vmatprep.subr.mxu0 0.0
      %602 = vmatpush1.msra.mxu0 0.0
      %603 = vmatprep.subr.mxu0 0.0
      %604 = vmatpush1.msra.mxu0 0.0
      %605 = vmatprep.subr.mxu0 0.0
      %606 = vmatpush1.msra.mxu0 0.0
      %607 = vmatprep.subr.mxu0 0.0
      %608 = vmatpush1.msra.mxu0 0.0
      %609 = vmatprep.subr.mxu0 0.0
      %610 = vmatpush1.msra.mxu0 0.0
      %611 = vmatprep.subr.mxu0 0.0
      %612 = vmatpush1.msra.mxu0 0.0
      %613 = vmatprep.subr.mxu0 0.0
      %614 = vmatpush1.msra.mxu0 0.0
      %615 = vmatprep.subr.mxu0 0.0
      %616 = vmatpush1.msra.mxu0 0.0
      %617 = vmatprep.subr.mxu0 0.0
      %618 = vmatpush1.msra.mxu0 0.0
      %619 = vmatprep.subr.mxu0 0.0
      %620 = vmatpush1.msra.mxu0 0.0
      %621 = vmatprep.subr.mxu0 0.0
      %622 = vmatpush1.msra.mxu0 0.0
      %623 = vmatprep.subr.mxu0 0.0
      %624 = vmatpush1.msra.mxu0 0.0
      %625 = vmatprep.subr.mxu0 0.0
      %626 = vmatpush1.msra.mxu0 0.0
      %627 = vmatprep.subr.mxu0 0.0
      %628 = vmatpush1.msra.mxu0 0.0
      %629 = vmatprep.subr.mxu0 0.0
      %630 = vmatpush1.msra.mxu0 0.0
      %631 = vmatprep.subr.mxu0 0.0
      %632 = vmatpush1.msra.mxu0 %v599
      %633 = vmatprep.subr.mxu0 0.0
      %634 = vmatpush2.msra.mxu0 0.0
      %635 = vmatprep.subr.mxu0 0.0
      %636 = vmatpush2.msra.mxu0 0.0
      %637 = vmatprep.subr.mxu0 0.0
      %638 = vmatpush2.msra.mxu0 0.0
      %639 = vmatprep.subr.mxu0 0.0
      %640 = vmatpush2.msra.mxu0 0.0
      %641 = vmatprep.subr.mxu0 0.0
      %642 = vmatpush2.msra.mxu0 0.0
      %643 = vmatprep.subr.mxu0 0.0
      %644 = vmatpush2.msra.mxu0 0.0
      %645 = vmatprep.subr.mxu0 0.0
      %646 = vmatpush2.msra.mxu0 0.0
      %647 = vmatprep.subr.mxu0 0.0
      %648 = vmatpush2.msra.mxu0 0.0
      %649 = vmatprep.subr.mxu0 0.0
      %650 = vmatpush2.msra.mxu0 0.0
      %651 = vmatprep.subr.mxu0 0.0
      %652 = vmatpush2.msra.mxu0 0.0
      %653 = vmatprep.subr.mxu0 0.0
      %654 = vmatpush2.msra.mxu0 0.0
      %655 = vmatprep.subr.mxu0 0.0
      %656 = vmatpush2.msra.mxu0 0.0
      %657 = vmatprep.subr.mxu0 0.0
      %658 = vmatpush2.msra.mxu0 0.0
      %659 = vmatprep.subr.mxu0 0.0
      %660 = vmatpush2.msra.mxu0 0.0
      %661 = vmatprep.subr.mxu0 0.0
      %662 = vmatpush2.msra.mxu0 0.0
      %663 = vmatprep.subr.mxu0 0.0
      %664 = vmatpush2.msra.mxu0 0.0
      %665 = vmatprep.mubr.f32.mxu0 0.0
      %666 = vmatmul.mubr.f32.gmra.mxu0 %v592
      %v667 = vpop.f32.mrf.mxu0
      %v668 = vadd.f32 %v583, %v667
      %v669 = vpop.f32.mrf.mxu0
      %670 = vmatprep.mubr.f32.mxu0 0.0
      %671 = vmatmul.mubr.f32.gmra.mxu0 %v595
      %v672 = vpop.f32.mrf.mxu0
      %v673 = vadd.f32 %v588, %v672
      %v674 = vpop.f32.mrf.mxu0
      %675 = vdwg.mxu0
      %v676 = vmax.f32 %v668, 0.0
      %677 = vst [vmem:[%s547] sm:$0xff] %v676
      %v678 = vld [vmem:[%s5] sm:$0xff]
      %v679 = vld [vmem:[%s6] sm:$0xff]
      %681 = vset.pattern.permute.xlu0 0
      %682 = vperm.xlu0 %681, %v679
      %v683 = vpop.permute.xlu0 %682
      %vm685 = vcmask 64512
      %v687 = vsel %vm685, %v678, 0
      %689 = vmatprep.subr.mxu0 0.0
      %690 = vmatpush1.msra.mxu0 0.0
      %691 = vmatprep.subr.mxu0 0.0
      %692 = vmatpush1.msra.mxu0 0.0
      %693 = vmatprep.subr.mxu0 0.0
      %694 = vmatpush1.msra.mxu0 0.0
      %695 = vmatprep.subr.mxu0 0.0
      %696 = vmatpush1.msra.mxu0 0.0
      %697 = vmatprep.subr.mxu0 0.0
      %698 = vmatpush1.msra.mxu0 0.0
      %699 = vmatprep.subr.mxu0 0.0
      %700 = vmatpush1.msra.mxu0 0.0
      %701 = vmatprep.subr.mxu0 0.0
      %702 = vmatpush1.msra.mxu0 0.0
      %703 = vmatprep.subr.mxu0 0.0
      %704 = vmatpush1.msra.mxu0 0.0
      %705 = vmatprep.subr.mxu0 0.0
      %706 = vmatpush1.msra.mxu0 0.0
      %707 = vmatprep.subr.mxu0 0.0
      %708 = vmatpush1.msra.mxu0 0.0
      %709 = vmatprep.subr.mxu0 0.0
      %710 = vmatpush1.msra.mxu0 0.0
      %711 = vmatprep.subr.mxu0 0.0
      %712 = vmatpush1.msra.mxu0 0.0
      %713 = vmatprep.subr.mxu0 0.0
      %714 = vmatpush1.msra.mxu0 0.0
      %715 = vmatprep.subr.mxu0 0.0
      %716 = vmatpush1.msra.mxu0 0.0
      %717 = vmatprep.subr.mxu0 0.0
      %718 = vmatpush1.msra.mxu0 0.0
      %719 = vmatprep.subr.mxu0 0.0
      %720 = vmatpush1.msra.mxu0 %v673
      %721 = vmatprep.subr.mxu0 0.0
      %722 = vmatpush2.msra.mxu0 0.0
      %723 = vmatprep.subr.mxu0 0.0
      %724 = vmatpush2.msra.mxu0 0.0
      %725 = vmatprep.subr.mxu0 0.0
      %726 = vmatpush2.msra.mxu0 0.0
      %727 = vmatprep.subr.mxu0 0.0
      %728 = vmatpush2.msra.mxu0 0.0
      %729 = vmatprep.subr.mxu0 0.0
      %730 = vmatpush2.msra.mxu0 0.0
      %731 = vmatprep.subr.mxu0 0.0
      %732 = vmatpush2.msra.mxu0 0.0
      %733 = vmatprep.subr.mxu0 0.0
      %734 = vmatpush2.msra.mxu0 0.0
      %735 = vmatprep.subr.mxu0 0.0
      %736 = vmatpush2.msra.mxu0 0.0
      %737 = vmatprep.subr.mxu0 0.0
      %738 = vmatpush2.msra.mxu0 0.0
      %739 = vmatprep.subr.mxu0 0.0
      %740 = vmatpush2.msra.mxu0 0.0
      %741 = vmatprep.subr.mxu0 0.0
      %742 = vmatpush2.msra.mxu0 0.0
      %743 = vmatprep.subr.mxu0 0.0
      %744 = vmatpush2.msra.mxu0 0.0
      %745 = vmatprep.subr.mxu0 0.0
      %746 = vmatpush2.msra.mxu0 0.0
      %747 = vmatprep.subr.mxu0 0.0
      %748 = vmatpush2.msra.mxu0 0.0
      %749 = vmatprep.subr.mxu0 0.0
      %750 = vmatpush2.msra.mxu0 0.0
      %751 = vmatprep.subr.mxu0 0.0
      %752 = vmatpush2.msra.mxu0 0.0
      %753 = vmatprep.mubr.f32.mxu0 0.0
      %754 = vmatmul.mubr.f32.gmra.mxu0 %v687
      %v755 = vpop.f32.mrf.mxu0
      %v756 = vadd.f32 %v683, %v755
      %v757 = vpop.f32.mrf.mxu0
      %758 = vdwg.mxu0
      %v759 = vxor.u32 %v756, 2147483648
      %v760 = vmul.f32 %v759, 1.442695
      %v761 = vpow.pop %v760
      %v762 = vadd.f32 %v761, 1.0
      %v763 = vrcp.pop %v762
      %v764 = vmul.f32 1.0, %v763
      %v765 = vmul.f32 %v673, %v764
      %v766 = vmax.f32 %v765, 0.0
      %767 = vrot.lane.b32.xlu0 %v766, 1
      %v768 = vpop.permute.xlu0 %767
      %v769 = vsel %vm562, 1, 0
      %vm770 = vcmp.eq.s32.totalorder %v769, 1
      %v771 = vsel %vm770, %v768, 0.0
      %772 = vrot.lane.b32.xlu0 %v766, 127
      %v773 = vpop.permute.xlu0 %772
      %v774 = vsel %vm566, 1, 0
      %vm775 = vcmp.eq.s32.totalorder %v774, 1
      %v776 = vsel %vm775, %v773, 0.0
      %v777 = vld [vmem:[%s7] sm:$0xff]
      %v778 = vld [vmem:[%s7 + $0x8] sm:$0xff]
      %v779 = vld [vmem:[%s8] sm:$0xff]
      %v780 = vld [vmem:[%s8 + $0x8] sm:$0xff]
      %782 = vset.pattern.permute.xlu0 0
      %783 = vperm.xlu0 %782, %v779
      %v784 = vpop.permute.xlu0 %783
      %787 = vset.pattern.permute.xlu0 0
      %788 = vperm.xlu0 %787, %v780
      %v789 = vpop.permute.xlu0 %788
      %vm791 = vcmask 195584
      %v793 = vsel %vm791, %v777, 0
      %v796 = vsel %vm791, %v778, 0
      %798 = vmatprep.subr.mxu0 0.0
      %799 = vmatpush1.msra.mxu0 0.0
      %800 = vmatprep.subr.mxu0 0.0
      %801 = vmatpush1.msra.mxu0 0.0
      %802 = vmatprep.subr.mxu0 0.0
      %803 = vmatpush1.msra.mxu0 0.0
      %804 = vmatprep.subr.mxu0 0.0
      %805 = vmatpush1.msra.mxu0 0.0
      %806 = vmatprep.subr.mxu0 0.0
      %807 = vmatpush1.msra.mxu0 0.0
      %808 = vmatprep.subr.mxu0 0.0
      %809 = vmatpush1.msra.mxu0 0.0
      %810 = vmatprep.subr.mxu0 0.0
      %811 = vmatpush1.msra.mxu0 0.0
      %812 = vmatprep.subr.mxu0 0.0
      %813 = vmatpush1.msra.mxu0 0.0
      %814 = vmatprep.subr.mxu0 0.0
      %815 = vmatpush1.msra.mxu0 0.0
      %816 = vmatprep.subr.mxu0 0.0
      %817 = vmatpush1.msra.mxu0 0.0
      %818 = vmatprep.subr.mxu0 0.0
      %819 = vmatpush1.msra.mxu0 0.0
      %820 = vmatprep.subr.mxu0 0.0
      %821 = vmatpush1.msra.mxu0 0.0
      %822 = vmatprep.subr.mxu0 0.0
      %823 = vmatpush1.msra.mxu0 0.0
      %824 = vmatprep.subr.mxu0 0.0
      %825 = vmatpush1.msra.mxu0 %v776
      %826 = vmatprep.subr.mxu0 0.0
      %827 = vmatpush1.msra.mxu0 %v766
      %828 = vmatprep.subr.mxu0 0.0
      %829 = vmatpush1.msra.mxu0 %v771
      %830 = vmatprep.subr.mxu0 0.0
      %831 = vmatpush2.msra.mxu0 0.0
      %832 = vmatprep.subr.mxu0 0.0
      %833 = vmatpush2.msra.mxu0 0.0
      %834 = vmatprep.subr.mxu0 0.0
      %835 = vmatpush2.msra.mxu0 0.0
      %836 = vmatprep.subr.mxu0 0.0
      %837 = vmatpush2.msra.mxu0 0.0
      %838 = vmatprep.subr.mxu0 0.0
      %839 = vmatpush2.msra.mxu0 0.0
      %840 = vmatprep.subr.mxu0 0.0
      %841 = vmatpush2.msra.mxu0 0.0
      %842 = vmatprep.subr.mxu0 0.0
      %843 = vmatpush2.msra.mxu0 0.0
      %844 = vmatprep.subr.mxu0 0.0
      %845 = vmatpush2.msra.mxu0 0.0
      %846 = vmatprep.subr.mxu0 0.0
      %847 = vmatpush2.msra.mxu0 0.0
      %848 = vmatprep.subr.mxu0 0.0
      %849 = vmatpush2.msra.mxu0 0.0
      %850 = vmatprep.subr.mxu0 0.0
      %851 = vmatpush2.msra.mxu0 0.0
      %852 = vmatprep.subr.mxu0 0.0
      %853 = vmatpush2.msra.mxu0 0.0
      %854 = vmatprep.subr.mxu0 0.0
      %855 = vmatpush2.msra.mxu0 0.0
      %856 = vmatprep.subr.mxu0 0.0
      %857 = vmatpush2.msra.mxu0 0.0
      %858 = vmatprep.subr.mxu0 0.0
      %859 = vmatpush2.msra.mxu0 0.0
      %860 = vmatprep.subr.mxu0 0.0
      %861 = vmatpush2.msra.mxu0 0.0
      %862 = vmatprep.mubr.f32.mxu0 0.0
      %863 = vmatmul.mubr.f32.gmra.mxu0 %v793
      %v864 = vpop.f32.mrf.mxu0
      %v865 = vadd.f32 %v784, %v864
      %v866 = vpop.f32.mrf.mxu0
      %867 = vmatprep.mubr.f32.mxu0 0.0
      %868 = vmatmul.mubr.f32.gmra.mxu0 %v796
      %v869 = vpop.f32.mrf.mxu0
      %v870 = vadd.f32 %v789, %v869
      %v871 = vpop.f32.mrf.mxu0
      %872 = vdwg.mxu0
      %v873 = vld [vmem:[%s9] sm:$0xff]
      %v874 = vld [vmem:[%s9 + $0x8] sm:$0xff]
      %v875 = vld [vmem:[%s10] sm:$0xff]
      %v876 = vld [vmem:[%s10 + $0x8] sm:$0xff]
      %878 = vset.pattern.permute.xlu0 0
      %879 = vperm.xlu0 %878, %v875
      %v880 = vpop.permute.xlu0 %879
      %883 = vset.pattern.permute.xlu0 0
      %884 = vperm.xlu0 %883, %v876
      %v885 = vpop.permute.xlu0 %884
      %vm887 = vcmask 130048
      %v889 = vsel %vm887, %v873, 0
      %v892 = vsel %vm887, %v874, 0
      %894 = vmatprep.subr.mxu0 0.0
      %895 = vmatpush1.msra.mxu0 0.0
      %896 = vmatprep.subr.mxu0 0.0
      %897 = vmatpush1.msra.mxu0 0.0
      %898 = vmatprep.subr.mxu0 0.0
      %899 = vmatpush1.msra.mxu0 0.0
      %900 = vmatprep.subr.mxu0 0.0
      %901 = vmatpush1.msra.mxu0 0.0
      %902 = vmatprep.subr.mxu0 0.0
      %903 = vmatpush1.msra.mxu0 0.0
      %904 = vmatprep.subr.mxu0 0.0
      %905 = vmatpush1.msra.mxu0 0.0
      %906 = vmatprep.subr.mxu0 0.0
      %907 = vmatpush1.msra.mxu0 0.0
      %908 = vmatprep.subr.mxu0 0.0
      %909 = vmatpush1.msra.mxu0 0.0
      %910 = vmatprep.subr.mxu0 0.0
      %911 = vmatpush1.msra.mxu0 0.0
      %912 = vmatprep.subr.mxu0 0.0
      %913 = vmatpush1.msra.mxu0 0.0
      %914 = vmatprep.subr.mxu0 0.0
      %915 = vmatpush1.msra.mxu0 0.0
      %916 = vmatprep.subr.mxu0 0.0
      %917 = vmatpush1.msra.mxu0 0.0
      %918 = vmatprep.subr.mxu0 0.0
      %919 = vmatpush1.msra.mxu0 0.0
      %920 = vmatprep.subr.mxu0 0.0
      %921 = vmatpush1.msra.mxu0 0.0
      %922 = vmatprep.subr.mxu0 0.0
      %923 = vmatpush1.msra.mxu0 %v870
      %924 = vmatprep.subr.mxu0 0.0
      %925 = vmatpush1.msra.mxu0 %v865
      %926 = vmatprep.subr.mxu0 0.0
      %927 = vmatpush2.msra.mxu0 0.0
      %928 = vmatprep.subr.mxu0 0.0
      %929 = vmatpush2.msra.mxu0 0.0
      %930 = vmatprep.subr.mxu0 0.0
      %931 = vmatpush2.msra.mxu0 0.0
      %932 = vmatprep.subr.mxu0 0.0
      %933 = vmatpush2.msra.mxu0 0.0
      %934 = vmatprep.subr.mxu0 0.0
      %935 = vmatpush2.msra.mxu0 0.0
      %936 = vmatprep.subr.mxu0 0.0
      %937 = vmatpush2.msra.mxu0 0.0
      %938 = vmatprep.subr.mxu0 0.0
      %939 = vmatpush2.msra.mxu0 0.0
      %940 = vmatprep.subr.mxu0 0.0
      %941 = vmatpush2.msra.mxu0 0.0
      %942 = vmatprep.subr.mxu0 0.0
      %943 = vmatpush2.msra.mxu0 0.0
      %944 = vmatprep.subr.mxu0 0.0
      %945 = vmatpush2.msra.mxu0 0.0
      %946 = vmatprep.subr.mxu0 0.0
      %947 = vmatpush2.msra.mxu0 0.0
      %948 = vmatprep.subr.mxu0 0.0
      %949 = vmatpush2.msra.mxu0 0.0
      %950 = vmatprep.subr.mxu0 0.0
      %951 = vmatpush2.msra.mxu0 0.0
      %952 = vmatprep.subr.mxu0 0.0
      %953 = vmatpush2.msra.mxu0 0.0
      %954 = vmatprep.subr.mxu0 0.0
      %955 = vmatpush2.msra.mxu0 0.0
      %956 = vmatprep.subr.mxu0 0.0
      %957 = vmatpush2.msra.mxu0 0.0
      %958 = vmatprep.mubr.f32.mxu0 0.0
      %959 = vmatmul.mubr.f32.gmra.mxu0 %v889
      %v960 = vpop.f32.mrf.mxu0
      %v961 = vadd.f32 %v880, %v960
      %v962 = vpop.f32.mrf.mxu0
      %963 = vmatprep.mubr.f32.mxu0 0.0
      %964 = vmatmul.mubr.f32.gmra.mxu0 %v892
      %v965 = vpop.f32.mrf.mxu0
      %v966 = vadd.f32 %v885, %v965
      %v967 = vpop.f32.mrf.mxu0
      %968 = vdwg.mxu0
      %v969 = vxor.u32 %v961, 2147483648
      %v970 = vxor.u32 %v966, 2147483648
      %v971 = vmul.f32 %v969, 1.442695
      %v972 = vpow.pop %v971
      %v973 = vmul.f32 %v970, 1.442695
      %v974 = vpow.pop %v973
      %v975 = vadd.f32 %v972, 1.0
      %v976 = vadd.f32 %v974, 1.0
      %v977 = vrcp.pop %v975
      %v978 = vmul.f32 1.0, %v977
      %v979 = vrcp.pop %v976
      %v980 = vmul.f32 1.0, %v979
      %v981 = vmul.f32 %v865, %v978
      %v982 = vmul.f32 %v870, %v980
      %v983 = vmax.f32 %v981, 0.0
      %v984 = vmax.f32 %v982, 0.0
      %985 = vst [vmem:[%s547 + $0x8] sm:$0xff] %v983
      %986 = vst [vmem:[%s547 + $0x10] sm:$0xff] %v984
      %987 = vrot.lane.b32.xlu0 %v575, 1
      %v988 = vpop.permute.xlu0 %987
      %v989 = vsel %vm770, %v988, -1e+30
      %990 = vrot.lane.b32.xlu0 %v575, 127
      %v991 = vpop.permute.xlu0 %990
      %v992 = vsel %vm775, %v991, -1e+30
      %v993 = vmax.f32 %v989, %v575
      %v994 = vmax.f32 %v993, %v992
      %v995 = vld [vmem:[%s3] sm:$0xff]
      %v996 = vld [vmem:[%s4] sm:$0xff]
      %998 = vset.pattern.permute.xlu0 0
      %999 = vperm.xlu0 %998, %v996
      %v1000 = vpop.permute.xlu0 %999
      %v1003 = vsel %vm590, %v995, 0
      %v1006 = vsel %vm597, %v994, 0
      %1008 = vmatprep.subr.mxu0 0.0
      %1009 = vmatpush1.msra.mxu0 0.0
      %1010 = vmatprep.subr.mxu0 0.0
      %1011 = vmatpush1.msra.mxu0 0.0
      %1012 = vmatprep.subr.mxu0 0.0
      %1013 = vmatpush1.msra.mxu0 0.0
      %1014 = vmatprep.subr.mxu0 0.0
      %1015 = vmatpush1.msra.mxu0 0.0
      %1016 = vmatprep.subr.mxu0 0.0
      %1017 = vmatpush1.msra.mxu0 0.0
      %1018 = vmatprep.subr.mxu0 0.0
      %1019 = vmatpush1.msra.mxu0 0.0
      %1020 = vmatprep.subr.mxu0 0.0
      %1021 = vmatpush1.msra.mxu0 0.0
      %1022 = vmatprep.subr.mxu0 0.0
      %1023 = vmatpush1.msra.mxu0 0.0
      %1024 = vmatprep.subr.mxu0 0.0
      %1025 = vmatpush1.msra.mxu0 0.0
      %1026 = vmatprep.subr.mxu0 0.0
      %1027 = vmatpush1.msra.mxu0 0.0
      %1028 = vmatprep.subr.mxu0 0.0
      %1029 = vmatpush1.msra.mxu0 0.0
      %1030 = vmatprep.subr.mxu0 0.0
      %1031 = vmatpush1.msra.mxu0 0.0
      %1032 = vmatprep.subr.mxu0 0.0
      %1033 = vmatpush1.msra.mxu0 0.0
      %1034 = vmatprep.subr.mxu0 0.0
      %1035 = vmatpush1.msra.mxu0 0.0
      %1036 = vmatprep.subr.mxu0 0.0
      %1037 = vmatpush1.msra.mxu0 0.0
      %1038 = vmatprep.subr.mxu0 0.0
      %1039 = vmatpush1.msra.mxu0 %v1006
      %1040 = vmatprep.subr.mxu0 0.0
      %1041 = vmatpush2.msra.mxu0 0.0
      %1042 = vmatprep.subr.mxu0 0.0
      %1043 = vmatpush2.msra.mxu0 0.0
      %1044 = vmatprep.subr.mxu0 0.0
      %1045 = vmatpush2.msra.mxu0 0.0
      %1046 = vmatprep.subr.mxu0 0.0
      %1047 = vmatpush2.msra.mxu0 0.0
      %1048 = vmatprep.subr.mxu0 0.0
      %1049 = vmatpush2.msra.mxu0 0.0
      %1050 = vmatprep.subr.mxu0 0.0
      %1051 = vmatpush2.msra.mxu0 0.0
      %1052 = vmatprep.subr.mxu0 0.0
      %1053 = vmatpush2.msra.mxu0 0.0
      %1054 = vmatprep.subr.mxu0 0.0
      %1055 = vmatpush2.msra.mxu0 0.0
      %1056 = vmatprep.subr.mxu0 0.0
      %1057 = vmatpush2.msra.mxu0 0.0
      %1058 = vmatprep.subr.mxu0 0.0
      %1059 = vmatpush2.msra.mxu0 0.0
      %1060 = vmatprep.subr.mxu0 0.0
      %1061 = vmatpush2.msra.mxu0 0.0
      %1062 = vmatprep.subr.mxu0 0.0
      %1063 = vmatpush2.msra.mxu0 0.0
      %1064 = vmatprep.subr.mxu0 0.0
      %1065 = vmatpush2.msra.mxu0 0.0
      %1066 = vmatprep.subr.mxu0 0.0
      %1067 = vmatpush2.msra.mxu0 0.0
      %1068 = vmatprep.subr.mxu0 0.0
      %1069 = vmatpush2.msra.mxu0 0.0
      %1070 = vmatprep.subr.mxu0 0.0
      %1071 = vmatpush2.msra.mxu0 0.0
      %1072 = vmatprep.mubr.f32.mxu0 0.0
      %1073 = vmatmul.mubr.f32.gmra.mxu0 %v1003
      %v1074 = vpop.f32.mrf.mxu0
      %v1075 = vadd.f32 %v1000, %v1074
      %v1076 = vpop.f32.mrf.mxu0
      %1077 = vdwg.mxu0
      %v1078 = vmax.f32 %v1075, 0.0
      %1079 = vst [vmem:[%s547 + $0x18] sm:$0xff] %v1078
      %v1080 = vld [vmem:[%s547] sm:$0xff]
      %v1081 = vld [vmem:[%s547 + $0x8] sm:$0xff]
      %v1082 = vld [vmem:[%s547 + $0x10] sm:$0xff]
      %v1083 = vld [vmem:[%s547 + $0x18] sm:$0xff]
      %v1084 = vsel %vm550, 1, 0
      %vm1085 = vcmp.eq.s32.totalorder %v1084, 1
      %v1086 = vsel %vm1085, %v1080, 0.0
      %v1087 = vsel %vm1085, %v1081, 0.0
      %v1088 = vsel %vm1085, %v1082, 0.0
      %v1089 = vsel %vm1085, %v1083, 0.0
      %1090 = vadd.xlane.f32.xlu0 %v1086
      %v1091 = vpop.xlane.xlu0 %1090
      %1092 = vadd.xlane.f32.xlu0 %v1087
      %v1093 = vpop.xlane.xlu0 %1092
      %1094 = vadd.xlane.f32.xlu0 %v1088
      %v1095 = vpop.xlane.xlu0 %1094
      %1096 = vadd.xlane.f32.xlu0 %v1089
      %v1097 = vpop.xlane.xlu0 %1096
      %v1098 = vmul.f32 %v1091, 0.0625
      %v1099 = vmul.f32 %v1093, 0.0625
      %v1100 = vmul.f32 %v1095, 0.0625
      %v1101 = vmul.f32 %v1097, 0.0625
      %v1102 = vsel %vm1085, %v1080, -1e+30
      %v1103 = vsel %vm1085, %v1081, -1e+30
      %v1104 = vsel %vm1085, %v1082, -1e+30
      %v1105 = vsel %vm1085, %v1083, -1e+30
      %1106 = vmax.xlane.f32.xlu0 %v1102
      %v1107 = vpop.xlane.xlu0 %1106
      %1108 = vmax.xlane.f32.xlu0 %v1103
      %v1109 = vpop.xlane.xlu0 %1108
      %1110 = vmax.xlane.f32.xlu0 %v1104
      %v1111 = vpop.xlane.xlu0 %1110
      %1112 = vmax.xlane.f32.xlu0 %v1105
      %v1113 = vpop.xlane.xlu0 %1112
      %vm1114 = vcmask 7168
      %v1115 = vsel %vm1114, %v1098, %v1107
      %v1116 = vsel %vm1114, %v1099, %v1109
      %v1117 = vsel %vm1114, %v1100, %v1111
      %v1118 = vsel %vm1114, %v1101, %v1113
      %v1119 = vld [vmem:[%s11] sm:$0x3]
      %v1120 = vld [vmem:[%s12] sm:$0x3]
      %1122 = vset.pattern.permute.xlu0 0
      %1123 = vperm.xlu0 %1122, %v1120
      %v1124 = vpop.permute.xlu0 %1123
      %vm1126 = vcmask 261120
      %v1128 = vsel %vm1126, %v1119, 0
      %1130 = vmatprep.subr.mxu0 0.0
      %1131 = vmatpush1.msra.mxu0 0.0
      %1132 = vmatprep.subr.mxu0 0.0
      %1133 = vmatpush1.msra.mxu0 0.0
      %1134 = vmatprep.subr.mxu0 0.0
      %1135 = vmatpush1.msra.mxu0 0.0
      %1136 = vmatprep.subr.mxu0 0.0
      %1137 = vmatpush1.msra.mxu0 0.0
      %1138 = vmatprep.subr.mxu0 0.0
      %1139 = vmatpush1.msra.mxu0 0.0
      %1140 = vmatprep.subr.mxu0 0.0
      %1141 = vmatpush1.msra.mxu0 0.0
      %1142 = vmatprep.subr.mxu0 0.0
      %1143 = vmatpush1.msra.mxu0 0.0
      %1144 = vmatprep.subr.mxu0 0.0
      %1145 = vmatpush1.msra.mxu0 0.0
      %1146 = vmatprep.subr.mxu0 0.0
      %1147 = vmatpush1.msra.mxu0 0.0
      %1148 = vmatprep.subr.mxu0 0.0
      %1149 = vmatpush1.msra.mxu0 0.0
      %1150 = vmatprep.subr.mxu0 0.0
      %1151 = vmatpush1.msra.mxu0 0.0
      %1152 = vmatprep.subr.mxu0 0.0
      %1153 = vmatpush1.msra.mxu0 0.0
      %1154 = vmatprep.subr.mxu0 0.0
      %1155 = vmatpush1.msra.mxu0 %v1118
      %1156 = vmatprep.subr.mxu0 0.0
      %1157 = vmatpush1.msra.mxu0 %v1117
      %1158 = vmatprep.subr.mxu0 0.0
      %1159 = vmatpush1.msra.mxu0 %v1116
      %1160 = vmatprep.subr.mxu0 0.0
      %1161 = vmatpush1.msra.mxu0 %v1115
      %1162 = vmatprep.subr.mxu0 0.0
      %1163 = vmatpush2.msra.mxu0 0.0
      %1164 = vmatprep.subr.mxu0 0.0
      %1165 = vmatpush2.msra.mxu0 0.0
      %1166 = vmatprep.subr.mxu0 0.0
      %1167 = vmatpush2.msra.mxu0 0.0
      %1168 = vmatprep.subr.mxu0 0.0
      %1169 = vmatpush2.msra.mxu0 0.0
      %1170 = vmatprep.subr.mxu0 0.0
      %1171 = vmatpush2.msra.mxu0 0.0
      %1172 = vmatprep.subr.mxu0 0.0
      %1173 = vmatpush2.msra.mxu0 0.0
      %1174 = vmatprep.subr.mxu0 0.0
      %1175 = vmatpush2.msra.mxu0 0.0
      %1176 = vmatprep.subr.mxu0 0.0
      %1177 = vmatpush2.msra.mxu0 0.0
      %1178 = vmatprep.subr.mxu0 0.0
      %1179 = vmatpush2.msra.mxu0 0.0
      %1180 = vmatprep.subr.mxu0 0.0
      %1181 = vmatpush2.msra.mxu0 0.0
      %1182 = vmatprep.subr.mxu0 0.0
      %1183 = vmatpush2.msra.mxu0 0.0
      %1184 = vmatprep.subr.mxu0 0.0
      %1185 = vmatpush2.msra.mxu0 0.0
      %1186 = vmatprep.subr.mxu0 0.0
      %1187 = vmatpush2.msra.mxu0 0.0
      %1188 = vmatprep.subr.mxu0 0.0
      %1189 = vmatpush2.msra.mxu0 0.0
      %1190 = vmatprep.subr.mxu0 0.0
      %1191 = vmatpush2.msra.mxu0 0.0
      %1192 = vmatprep.subr.mxu0 0.0
      %1193 = vmatpush2.msra.mxu0 0.0
      %1194 = vmatprep.mubr.f32.mxu0 0.0
      %1195 = vmatmul.mubr.f32.gmra.mxu0 %v1128
      %v1196 = vpop.f32.mrf.mxu0
      %v1197 = vadd.f32 %v1124, %v1196
      %v1198 = vpop.f32.mrf.mxu0
      %1199 = vdwg.mxu0
      %v1200 = vmax.f32 %v1197, 0.0
      %v1201 = vld [vmem:[%s13] sm:$0xff]
      %v1202 = vld [vmem:[%s13 + $0x8] sm:$0xff]
      %v1203 = vld [vmem:[%s13 + $0x10] sm:$0xff]
      %v1204 = vld [vmem:[%s13 + $0x18] sm:$0xff]
      %v1205 = vld [vmem:[%s14] sm:$0xff]
      %v1206 = vld [vmem:[%s14 + $0x8] sm:$0xff]
      %v1207 = vld [vmem:[%s14 + $0x10] sm:$0xff]
      %v1208 = vld [vmem:[%s14 + $0x18] sm:$0xff]
      %1210 = vset.pattern.permute.xlu0 0
      %1211 = vperm.xlu0 %1210, %v1205
      %v1212 = vpop.permute.xlu0 %1211
      %1215 = vset.pattern.permute.xlu0 0
      %1216 = vperm.xlu0 %1215, %v1206
      %v1217 = vpop.permute.xlu0 %1216
      %1220 = vset.pattern.permute.xlu0 0
      %1221 = vperm.xlu0 %1220, %v1207
      %v1222 = vpop.permute.xlu0 %1221
      %1225 = vset.pattern.permute.xlu0 0
      %1226 = vperm.xlu0 %1225, %v1208
      %v1227 = vpop.permute.xlu0 %1226
      %vm1229 = vcmask 15360
      %v1231 = vsel %vm1229, %v1201, 0
      %v1234 = vsel %vm1229, %v1202, 0
      %v1237 = vsel %vm1229, %v1203, 0
      %v1240 = vsel %vm1229, %v1204, 0
      %vm1242 = vcmask 1041408
      %v1244 = vsel %vm1242, %v1200, 0
      %1246 = vmatprep.subr.mxu0 0.0
      %1247 = vmatpush1.msra.mxu0 0.0
      %1248 = vmatprep.subr.mxu0 0.0
      %1249 = vmatpush1.msra.mxu0 0.0
      %1250 = vmatprep.subr.mxu0 0.0
      %1251 = vmatpush1.msra.mxu0 0.0
      %1252 = vmatprep.subr.mxu0 0.0
      %1253 = vmatpush1.msra.mxu0 0.0
      %1254 = vmatprep.subr.mxu0 0.0
      %1255 = vmatpush1.msra.mxu0 0.0
      %1256 = vmatprep.subr.mxu0 0.0
      %1257 = vmatpush1.msra.mxu0 0.0
      %1258 = vmatprep.subr.mxu0 0.0
      %1259 = vmatpush1.msra.mxu0 0.0
      %1260 = vmatprep.subr.mxu0 0.0
      %1261 = vmatpush1.msra.mxu0 0.0
      %1262 = vmatprep.subr.mxu0 0.0
      %1263 = vmatpush1.msra.mxu0 0.0
      %1264 = vmatprep.subr.mxu0 0.0
      %1265 = vmatpush1.msra.mxu0 0.0
      %1266 = vmatprep.subr.mxu0 0.0
      %1267 = vmatpush1.msra.mxu0 0.0
      %1268 = vmatprep.subr.mxu0 0.0
      %1269 = vmatpush1.msra.mxu0 0.0
      %1270 = vmatprep.subr.mxu0 0.0
      %1271 = vmatpush1.msra.mxu0 0.0
      %1272 = vmatprep.subr.mxu0 0.0
      %1273 = vmatpush1.msra.mxu0 0.0
      %1274 = vmatprep.subr.mxu0 0.0
      %1275 = vmatpush1.msra.mxu0 0.0
      %1276 = vmatprep.subr.mxu0 0.0
      %1277 = vmatpush1.msra.mxu0 %v1244
      %1278 = vmatprep.subr.mxu0 0.0
      %1279 = vmatpush2.msra.mxu0 0.0
      %1280 = vmatprep.subr.mxu0 0.0
      %1281 = vmatpush2.msra.mxu0 0.0
      %1282 = vmatprep.subr.mxu0 0.0
      %1283 = vmatpush2.msra.mxu0 0.0
      %1284 = vmatprep.subr.mxu0 0.0
      %1285 = vmatpush2.msra.mxu0 0.0
      %1286 = vmatprep.subr.mxu0 0.0
      %1287 = vmatpush2.msra.mxu0 0.0
      %1288 = vmatprep.subr.mxu0 0.0
      %1289 = vmatpush2.msra.mxu0 0.0
      %1290 = vmatprep.subr.mxu0 0.0
      %1291 = vmatpush2.msra.mxu0 0.0
      %1292 = vmatprep.subr.mxu0 0.0
      %1293 = vmatpush2.msra.mxu0 0.0
      %1294 = vmatprep.subr.mxu0 0.0
      %1295 = vmatpush2.msra.mxu0 0.0
      %1296 = vmatprep.subr.mxu0 0.0
      %1297 = vmatpush2.msra.mxu0 0.0
      %1298 = vmatprep.subr.mxu0 0.0
      %1299 = vmatpush2.msra.mxu0 0.0
      %1300 = vmatprep.subr.mxu0 0.0
      %1301 = vmatpush2.msra.mxu0 0.0
      %1302 = vmatprep.subr.mxu0 0.0
      %1303 = vmatpush2.msra.mxu0 0.0
      %1304 = vmatprep.subr.mxu0 0.0
      %1305 = vmatpush2.msra.mxu0 0.0
      %1306 = vmatprep.subr.mxu0 0.0
      %1307 = vmatpush2.msra.mxu0 0.0
      %1308 = vmatprep.subr.mxu0 0.0
      %1309 = vmatpush2.msra.mxu0 0.0
      %1310 = vmatprep.mubr.f32.mxu0 0.0
      %1311 = vmatmul.mubr.f32.gmra.mxu0 %v1231
      %v1312 = vpop.f32.mrf.mxu0
      %v1313 = vadd.f32 %v1212, %v1312
      %v1314 = vpop.f32.mrf.mxu0
      %1315 = vmatprep.mubr.f32.mxu0 0.0
      %1316 = vmatmul.mubr.f32.gmra.mxu0 %v1234
      %v1317 = vpop.f32.mrf.mxu0
      %v1318 = vadd.f32 %v1217, %v1317
      %v1319 = vpop.f32.mrf.mxu0
      %1320 = vmatprep.mubr.f32.mxu0 0.0
      %1321 = vmatmul.mubr.f32.gmra.mxu0 %v1237
      %v1322 = vpop.f32.mrf.mxu0
      %v1323 = vadd.f32 %v1222, %v1322
      %v1324 = vpop.f32.mrf.mxu0
      %1325 = vmatprep.mubr.f32.mxu0 0.0
      %1326 = vmatmul.mubr.f32.gmra.mxu0 %v1240
      %v1327 = vpop.f32.mrf.mxu0
      %v1328 = vadd.f32 %v1227, %v1327
      %v1329 = vpop.f32.mrf.mxu0
      %1330 = vdwg.mxu0
      %1335 = vrot.lane.b32.xlu0 %v1313, 127
      %v1336 = vpop.permute.xlu0 %1335
      %1337 = vrot.lane.b32.xlu0 %v1318, 127
      %v1338 = vpop.permute.xlu0 %1337
      %1339 = vrot.lane.b32.xlu0 %v1323, 127
      %v1340 = vpop.permute.xlu0 %1339
      %1341 = vrot.lane.b32.xlu0 %v1328, 127
      %v1342 = vpop.permute.xlu0 %1341
      %v1347 = vadd.f32 %v1313, %v1336
      %v1348 = vadd.f32 %v1318, %v1338
      %v1349 = vadd.f32 %v1323, %v1340
      %v1350 = vadd.f32 %v1328, %v1342
      %v1351 = vxor.u32 %v1347, 2147483648
      %v1352 = vxor.u32 %v1348, 2147483648
      %v1353 = vxor.u32 %v1349, 2147483648
      %v1354 = vxor.u32 %v1350, 2147483648
      %v1355 = vmul.f32 %v1351, 1.442695
      %v1356 = vpow.pop %v1355
      %v1357 = vmul.f32 %v1352, 1.442695
      %v1358 = vpow.pop %v1357
      %v1359 = vmul.f32 %v1353, 1.442695
      %v1360 = vpow.pop %v1359
      %v1361 = vmul.f32 %v1354, 1.442695
      %v1362 = vpow.pop %v1361
      %v1363 = vadd.f32 %v1356, 1.0
      %v1364 = vadd.f32 %v1358, 1.0
      %v1365 = vadd.f32 %v1360, 1.0
      %v1366 = vadd.f32 %v1362, 1.0
      %v1367 = vrcp.pop %v1363
      %v1368 = vmul.f32 1.0, %v1367
      %v1369 = vrcp.pop %v1364
      %v1370 = vmul.f32 1.0, %v1369
      %v1371 = vrcp.pop %v1365
      %v1372 = vmul.f32 1.0, %v1371
      %v1373 = vrcp.pop %v1366
      %v1374 = vmul.f32 1.0, %v1373
      %1376 = vset.pattern.permute.xlu0 0
      %1377 = vperm.xlu0 %1376, %v1368
      %v1378 = vpop.permute.xlu0 %1377
      %1381 = vset.pattern.permute.xlu0 0
      %1382 = vperm.xlu0 %1381, %v1370
      %v1383 = vpop.permute.xlu0 %1382
      %1386 = vset.pattern.permute.xlu0 0
      %1387 = vperm.xlu0 %1386, %v1372
      %v1388 = vpop.permute.xlu0 %1387
      %1391 = vset.pattern.permute.xlu0 0
      %1392 = vperm.xlu0 %1391, %v1374
      %v1393 = vpop.permute.xlu0 %1392
      %v1395 = vmul.f32 %v1378, %v1080
      %v1396 = vmul.f32 %v1383, %v1081
      %v1397 = vmul.f32 %v1388, %v1082
      %v1398 = vmul.f32 %v1393, %v1083
      %v1399 = vadd.f32 %v1395, %v1396
      %v1400 = vadd.f32 %v1399, %v1397
      %v1401 = vadd.f32 %v1400, %v1398
      %v1402 = vrot.slane %v1401, 4
      %v1403 = vadd.f32 %v1401, %v1402
      %v1404 = vrot.slane %v1403, 2
      %v1405 = vadd.f32 %v1403, %v1404
      %v1406 = vrot.slane %v1405, 1
      %v1407 = vadd.f32 %v1405, %v1406
      %v1408 = vrcp.pop 32.0
      %v1409 = vmul.f32 %v1407, %v1408
      %v1410 = vmax.f32 %v1395, %v1396
      %v1411 = vmax.f32 %v1397, %v1398
      %v1412 = vmax.f32 %v1410, %v1411
      %v1413 = vrot.slane %v1412, 4
      %v1414 = vmax.f32 %v1412, %v1413
      %v1415 = vrot.slane %v1414, 2
      %v1416 = vmax.f32 %v1414, %v1415
      %v1417 = vrot.slane %v1416, 1
      %v1418 = vmax.f32 %v1416, %v1417
      %vm1419 = vcmask 1040384
      %v1420 = vsel %vm1419, %v1409, %v1418
      %1421 = vrot.lane.b32.xlu0 %v1420, 3
      %v1422 = vpop.permute.xlu0 %1421
      %v1423 = vsel %vm554, 1, 0
      %vm1424 = vcmp.eq.s32.totalorder %v1423, 1
      %v1425 = vsel %vm1424, %v1422, 0.0
      %1426 = vrot.lane.b32.xlu0 %v1420, 2
      %v1427 = vpop.permute.xlu0 %1426
      %v1428 = vsel %vm558, 1, 0
      %vm1429 = vcmp.eq.s32.totalorder %v1428, 1
      %v1430 = vsel %vm1429, %v1427, 0.0
      %1431 = vrot.lane.b32.xlu0 %v1420, 1
      %v1432 = vpop.permute.xlu0 %1431
      %v1433 = vsel %vm770, %v1432, 0.0
      %1434 = vrot.lane.b32.xlu0 %v1420, 127
      %v1435 = vpop.permute.xlu0 %1434
      %v1436 = vsel %vm775, %v1435, 0.0
      %1437 = vrot.lane.b32.xlu0 %v1420, 126
      %v1438 = vpop.permute.xlu0 %1437
      %v1439 = vsel %vm570, 1, 0
      %vm1440 = vcmp.eq.s32.totalorder %v1439, 1
      %v1441 = vsel %vm1440, %v1438, 0.0
      %1442 = vrot.lane.b32.xlu0 %v1420, 125
      %v1443 = vpop.permute.xlu0 %1442
      %v1444 = vsel %vm574, 1, 0
      %vm1445 = vcmp.eq.s32.totalorder %v1444, 1
      %v1446 = vsel %vm1445, %v1443, 0.0
      %v1448 = vrot.slane %v1430, 6
      %v1451 = vrot.slane %v1433, 4
      %v1454 = vrot.slane %v1420, 2
      %v1457 = vrot.slane %v1441, 6
      %v1460 = vrot.slane %v1446, 4
      %v1462 = vsel %vm1242, %v1425, %v1448
      %v1463 = vsel %vm597, %v1462, %v1451
      %vm1464 = vcmask 1045504
      %v1465 = vsel %vm1464, %v1463, %v1454
      %v1466 = vsel %vm1242, %v1436, %v1457
      %v1467 = vsel %vm597, %v1466, %v1460
      %v1468 = vld [vmem:[%s15] sm:$0x1]
      %v1469 = vld [vmem:[#allocation2] sm:$0x1]
      %1471 = vset.pattern.permute.xlu0 0
      %1472 = vperm.xlu0 %1471, %v1469
      %v1473 = vpop.permute.xlu0 %1472
      %v1475 = vlaneseq
      %v1476 = vshrl.u32 %v1475, 7
      %v1477 = vsub.s32 0, %v1476
      %v1478 = vrot.slane %v1473, %v1477
      %vm1479 = vcmask 113664
      %v1481 = vsel %vm1479, %v1468, 0
      %v1484 = vsel %vm1464, %v1467, 0
      %1486 = vmatprep.subr.mxu0 0.0
      %1487 = vmatpush1.msra.mxu0 0.0
      %1488 = vmatprep.subr.mxu0 0.0
      %1489 = vmatpush1.msra.mxu0 0.0
      %1490 = vmatprep.subr.mxu0 0.0
      %1491 = vmatpush1.msra.mxu0 0.0
      %1492 = vmatprep.subr.mxu0 0.0
      %1493 = vmatpush1.msra.mxu0 0.0
      %1494 = vmatprep.subr.mxu0 0.0
      %1495 = vmatpush1.msra.mxu0 0.0
      %1496 = vmatprep.subr.mxu0 0.0
      %1497 = vmatpush1.msra.mxu0 0.0
      %1498 = vmatprep.subr.mxu0 0.0
      %1499 = vmatpush1.msra.mxu0 0.0
      %1500 = vmatprep.subr.mxu0 0.0
      %1501 = vmatpush1.msra.mxu0 0.0
      %1502 = vmatprep.subr.mxu0 0.0
      %1503 = vmatpush1.msra.mxu0 0.0
      %1504 = vmatprep.subr.mxu0 0.0
      %1505 = vmatpush1.msra.mxu0 0.0
      %1506 = vmatprep.subr.mxu0 0.0
      %1507 = vmatpush1.msra.mxu0 0.0
      %1508 = vmatprep.subr.mxu0 0.0
      %1509 = vmatpush1.msra.mxu0 0.0
      %1510 = vmatprep.subr.mxu0 0.0
      %1511 = vmatpush1.msra.mxu0 0.0
      %1512 = vmatprep.subr.mxu0 0.0
      %1513 = vmatpush1.msra.mxu0 0.0
      %1514 = vmatprep.subr.mxu0 0.0
      %1515 = vmatpush1.msra.mxu0 %v1484
      %1516 = vmatprep.subr.mxu0 0.0
      %1517 = vmatpush1.msra.mxu0 %v1465
      %1518 = vmatprep.subr.mxu0 0.0
      %1519 = vmatpush2.msra.mxu0 0.0
      %1520 = vmatprep.subr.mxu0 0.0
      %1521 = vmatpush2.msra.mxu0 0.0
      %1522 = vmatprep.subr.mxu0 0.0
      %1523 = vmatpush2.msra.mxu0 0.0
      %1524 = vmatprep.subr.mxu0 0.0
      %1525 = vmatpush2.msra.mxu0 0.0
      %1526 = vmatprep.subr.mxu0 0.0
      %1527 = vmatpush2.msra.mxu0 0.0
      %1528 = vmatprep.subr.mxu0 0.0
      %1529 = vmatpush2.msra.mxu0 0.0
      %1530 = vmatprep.subr.mxu0 0.0
      %1531 = vmatpush2.msra.mxu0 0.0
      %1532 = vmatprep.subr.mxu0 0.0
      %1533 = vmatpush2.msra.mxu0 0.0
      %1534 = vmatprep.subr.mxu0 0.0
      %1535 = vmatpush2.msra.mxu0 0.0
      %1536 = vmatprep.subr.mxu0 0.0
      %1537 = vmatpush2.msra.mxu0 0.0
      %1538 = vmatprep.subr.mxu0 0.0
      %1539 = vmatpush2.msra.mxu0 0.0
      %1540 = vmatprep.subr.mxu0 0.0
      %1541 = vmatpush2.msra.mxu0 0.0
      %1542 = vmatprep.subr.mxu0 0.0
      %1543 = vmatpush2.msra.mxu0 0.0
      %1544 = vmatprep.subr.mxu0 0.0
      %1545 = vmatpush2.msra.mxu0 0.0
      %1546 = vmatprep.subr.mxu0 0.0
      %1547 = vmatpush2.msra.mxu0 0.0
      %1548 = vmatprep.subr.mxu0 0.0
      %1549 = vmatpush2.msra.mxu0 0.0
      %1550 = vmatprep.mubr.f32.mxu0 0.0
      %1551 = vmatmul.mubr.f32.gmra.mxu0 %v1481
      %v1552 = vpop.f32.mrf.mxu0
      %v1553 = vadd.f32 %v1478, %v1552
      %v1554 = vpop.f32.mrf.mxu0
      %1555 = vdwg.mxu0
      %v1556 = vxor.u32 %v1553, 2147483648
      %v1557 = vmul.f32 %v1556, 1.442695
      %v1558 = vpow.pop %v1557
      %v1559 = vadd.f32 %v1558, 1.0
      %v1560 = vrcp.pop %v1559
      %v1561 = vmul.f32 1.0, %v1560
      %v1562 = vlaneseq
      %v1563 = vshrl.u32 %v1562, 7
      %v1564 = vsub.s32 0, %v1563
      %v1565 = vrot.slane %v1561, %v1564
      %v1566 = vmul.f32 %v1565, %v1395
      %v1567 = vmul.f32 %v1565, %v1396
      %v1568 = vmul.f32 %v1565, %v1397
      %v1569 = vmul.f32 %v1565, %v1398
      %1570 = vst [vmem:[%s547] sm:$0xff] %v1566
      %1571 = vst [vmem:[%s547 + $0x8] sm:$0xff] %v1567
      %1572 = vst [vmem:[%s547 + $0x10] sm:$0xff] %v1568
      %1573 = vst [vmem:[%s547 + $0x18] sm:$0xff] %v1569
      %p1574 = scmp.lt.s32.totalorder %s30, 1
      %s1575 = scalar_select %p1574, %s30, 1
      %s1576 = smul.addr %s1575, 4
      %s1577 = smul.addr %s1576, 8
      %s1578 = scalar_lea.vmem %s17, %s1577
      // Predicated region
      $region89: #{_lambda_.1} parent=87 // pred_check
        %p1579 = pneg %p410
      $region90: #{_lambda_.1} parent=87 // pred_check_branch
        %1581 = sbr.rel (%p1579) target = $region92
      $region91: #{_lambda_.1} parent=87 // pred_region
        _
      $region92: #{_lambda_.1} parent=87 // pred_fallthru
        _
    $region88: #{_lambda_.1} parent=5 // pred_fallthru
      _
    %p1582 = scmp.le.s32.totalorder 2, %s25
    // Predicated region
    $region93: #{_lambda_.1} parent=5 // pred_check
      %p1583 = pneg %p1582
    $region94: #{_lambda_.1} parent=5 // pred_check_branch
      %1585 = sbr.rel (%p1583) target = $region96
    $region95: #{_lambda_.1} parent=5 // pred_region
      %s1586 = ssub.s32 %s25, 2
      // Predicated region
      $region97: #{_lambda_.1} parent=95 // pred_check
        %p1587 = pneg %p416
      $region98: #{_lambda_.1} parent=95 // pred_check_branch
        %1589 = sbr.rel (%p1587) target = $region100
      $region99: #{_lambda_.1} parent=95 // pred_region
        %p1590 = scmp.lt.s32.totalorder %s31, 1
        %s1591 = scalar_select %p1590, %s31, 1
        %s1592 = smul.addr %s1591, 4
        %s1593 = smul.addr %s1592, 8
        %s1594 = scalar_lea.vmem %s17, %s1593
      $region100: #{_lambda_.1} parent=95 // pred_fallthru
        _
    $region96: #{_lambda_.1} parent=5 // pred_fallthru
      _
  $region6: #{_lambda_.1} parent=0 // loop_footer
    %s29 = sadd.s32 1, %s25
  $region7: #{_lambda_.1} parent=0 // loop_footer_branch
    %24 = sbr.rel target = $region3
  $region8: #{_lambda_.1} parent=0 // loop_exit
    _

</llo_original>
